<compile_context>
chip_gen: v6e
topology: v6e:2x2x1
jax: 0.10.0
libtpu: 0.0.40
codegen_flags: <defaults>
</compile_context>

<pallas_src>
import functools

import jax
import jax.numpy as jnp
from jax.experimental import pallas as pl
from jax.experimental.pallas import tpu as pltpu


# ---------------------------------------------------------------------------
# BN folding / parameter fusion
# ---------------------------------------------------------------------------
def fold_bn(gamma, beta, mean, var, eps=1e-5):
    scale = gamma / jnp.sqrt(var + eps)
    bias = beta - mean * scale
    return scale, bias


def fuse_params(params, dtype=jnp.float32):
    """Fold eval-mode BN scales into the conv weights; keep per-channel bias."""
    w1, w2, w3 = params["w1"], params["w2"], params["w3"]
    width = w1.shape[1]
    cout = w3.shape[1]
    s1, b1 = fold_bn(*params["bn1"])
    s2, b2 = fold_bn(*params["bn2"])
    s3, b3 = fold_bn(*params["bn3"])
    return {
        "w1": (w1 * s1[None, :]).astype(dtype),                       # (Cin, width)
        "w2": (w2.reshape(9, width, width) * s2[None, None, :]).astype(dtype),
        "w3": (w3 * s3[None, :]).astype(dtype),                       # (width, Cout)
        "b1": b1.reshape(1, width).astype(jnp.float32),
        "b2": b2.reshape(1, width).astype(jnp.float32),
        "b3": b3.reshape(1, cout).astype(jnp.float32),
    }


def _pick_row_chunk(h, w, target_rows=512):
    """Largest divisor of H such that chunk*W <= ~512 flattened matmul rows."""
    cap = max(1, target_rows // max(w, 1))
    best = 1
    for d in range(1, h + 1):
        if h % d == 0 and d <= cap:
            best = d
    return best


# ---------------------------------------------------------------------------
# Fused bottleneck kernel (one batch element per grid step)
# ---------------------------------------------------------------------------
def _qbottleneck_kernel(x_ref, w1_ref, b1_ref, w2_ref, b2_ref, w3_ref, b3_ref,
                        o_ref, p1_ref, *, H, W, TR):
    """conv1+bn1+relu -> VMEM padded scratch -> conv2(9-tap)+bn2+relu
    -> conv3+bn3 + residual + relu.  BN scales are pre-folded into weights."""
    Cin = x_ref.shape[-1]
    width = w1_ref.shape[-1]
    Cout = w3_ref.shape[-1]
    num_chunks = H // TR

    # Zero the scratch so its 1-pixel border acts as the 3x3 conv's zero pad.
    # Re-zeroed every grid step (cheap) so correctness holds when the batch
    # axis is split across TensorCores ("parallel" dimension semantics).
    p1_ref[...] = jnp.zeros(p1_ref.shape, p1_ref.dtype)

    w1 = w1_ref[...]
    b1 = b1_ref[...]

    # ---- conv1 (1x1) + bn1 (scale folded) + relu, row-chunked ----
    for c in range(num_chunks):
        r0 = c * TR
        xc = x_ref[0, r0:r0 + TR, :, :].reshape(TR * W, Cin)
        y1 = jnp.dot(xc, w1, preferred_element_type=jnp.float32)
        y1 = jnp.maximum(y1 + b1, 0.0)
        p1_ref[1 + r0:1 + r0 + TR, 1:1 + W, :] = (
            y1.reshape(TR, W, width).astype(p1_ref.dtype))

    w3 = w3_ref[...]
    b2 = b2_ref[...]
    b3 = b3_ref[...]

    # ---- conv2 (3x3, pad=1, stride=1) as in-VMEM 9-tap accumulation + bn2 +
    #      relu, then conv3 (1x1) + bn3 + residual add + relu, per row chunk --
    for c in range(num_chunks):
        r0 = c * TR
        acc = jnp.zeros((TR * W, width), jnp.float32)
        for ky in range(3):
            for kx in range(3):
                patch = p1_ref[r0 + ky:r0 + ky + TR, kx:kx + W, :]
                acc = acc + jnp.dot(
                    patch.reshape(TR * W, width),
                    w2_ref[ky * 3 + kx],
                    preferred_element_type=jnp.float32)
        y2 = jnp.maximum(acc + b2, 0.0).astype(x_ref.dtype)

        identity = x_ref[0, r0:r0 + TR, :, :].reshape(TR * W, Cin)
        y3 = jnp.dot(y2, w3, preferred_element_type=jnp.float32)
        y3 = jnp.maximum(y3 + b3 + identity.astype(jnp.float32), 0.0)
        o_ref[0, r0:r0 + TR, :, :] = y3.reshape(TR, W, Cout).astype(o_ref.dtype)


# ---------------------------------------------------------------------------
# Wrappers
# ---------------------------------------------------------------------------
def qbottleneck_forward_nhwc(x, params, stride=1):
    """Fused QBottleneck forward, NHWC activations (preferred fast path)."""
    if stride != 1:
        raise NotImplementedError("only the default stride=1 / downsample=None "
                                  "QBottleneck path is supported")
    N, H, W, Cin = x.shape
    dtype = x.dtype
    fused = fuse_params(params, dtype)
    width = fused["w1"].shape[1]
    Cout = fused["w3"].shape[1]
    if Cin != Cout:
        raise ValueError("residual path requires inplanes == planes*expansion "
                         f"(got Cin={Cin}, Cout={Cout}); downsample is not supported")

    TR = _pick_row_chunk(H, W)
    kernel = functools.partial(_qbottleneck_kernel, H=H, W=W, TR=TR)

    def _const2(n):
        return (0, 0)

    def _const3(n):
        return (0, 0, 0)

    return pl.pallas_call(
        kernel,
        out_shape=jax.ShapeDtypeStruct((N, H, W, Cout), dtype),
        grid=(N,),
        in_specs=[
            pl.BlockSpec((1, H, W, Cin), lambda n: (n, 0, 0, 0)),   # x / identity
            pl.BlockSpec((Cin, width), _const2),                    # w1 (bn1 folded)
            pl.BlockSpec((1, width), _const2),                      # b1
            pl.BlockSpec((9, width, width), _const3),               # w2 per-tap
            pl.BlockSpec((1, width), _const2),                      # b2
            pl.BlockSpec((width, Cout), _const2),                   # w3 (bn3 folded)
            pl.BlockSpec((1, Cout), _const2),                       # b3
        ],
        out_specs=pl.BlockSpec((1, H, W, Cout), lambda n: (n, 0, 0, 0)),
        scratch_shapes=[pltpu.VMEM((H + 2, W + 2, width), dtype)],  # padded conv1 out
        compiler_params=pltpu.CompilerParams(
            dimension_semantics=("parallel",),       # shard batch across v7x's 2 TCs
            vmem_limit_bytes=32 * 1024 * 1024,       # sized for v7x's 64 MiB VMEM
        ),
    )(x, fused["w1"], fused["b1"], fused["w2"], fused["b2"],
      fused["w3"], fused["b3"])


def qbottleneck_forward(x_nchw, params, stride=1):
    """NCHW wrapper matching the PyTorch interface.
    TODO(synk): in a full network keep activations NHWC end-to-end; these two
    transposes are interface glue only (each is an extra HBM pass)."""
    x = jnp.transpose(x_nchw, (0, 2, 3, 1))
    out = qbottleneck_forward_nhwc(x, params, stride=stride)
    return jnp.transpose(out, (0, 3, 1, 2))


# ---------------------------------------------------------------------------
# Pure-jnp reference (same folded-BN math, im2col conv) for verification
# ---------------------------------------------------------------------------
def im2col_3x3(x_nhwc, stride):
    N, H, W, C = x_nhwc.shape
    xp = jnp.pad(x_nhwc, ((0, 0), (1, 1), (1, 1), (0, 0)))
    Ho = (H + 2 - 3) // stride + 1
    Wo = (W + 2 - 3) // stride + 1
    cols = []
    for ky in range(3):
        for kx in range(3):
            patch = xp[:, ky:ky + (Ho - 1) * stride + 1:stride,
                          kx:kx + (Wo - 1) * stride + 1:stride, :]
            cols.append(patch)
    patches = jnp.concatenate(cols, axis=-1)
    return patches.reshape(N * Ho * Wo, 9 * C), (N, Ho, Wo)


def reference_forward_nhwc(x, params):
    f = fuse_params(params, x.dtype)
    N, H, W, Cin = x.shape
    width = f["w1"].shape[1]
    Cout = f["w3"].shape[1]

    y1 = jnp.maximum(x.reshape(-1, Cin) @ f["w1"] + f["b1"], 0.0)
    y1 = y1.reshape(N, H, W, width)

    patches, (N2, Ho, Wo) = im2col_3x3(y1, 1)
    y2 = jnp.maximum(patches @ f["w2"].reshape(9 * width, width) + f["b2"], 0.0)

    y3 = y2 @ f["w3"] + f["b3"] + x.reshape(-1, Cin)
    out = jnp.maximum(y3, 0.0).reshape(N2, Ho, Wo, Cout)
    return out


# ---------------------------------------------------------------------------
# Deterministic parameters + self-check
# ---------------------------------------------------------------------------
def make_params(key, inplanes, planes, base_width=64):
    width = int(planes * (base_width / 64.0))
    expansion = 4
    ks = jax.random.split(key, 12)

    def bn_params(k, c):
        k1, k2, k3, k4 = jax.random.split(k, 4)
        gamma = 1.0 + 0.1 * jax.random.normal(k1, (c,), jnp.float32)
        beta = 0.1 * jax.random.normal(k2, (c,), jnp.float32)
        mean = 0.1 * jax.random.normal(k3, (c,), jnp.float32)
        var = jnp.abs(jax.random.normal(k4, (c,), jnp.float32)) + 0.5
        return (gamma, beta, mean, var)

    return {
        # conv weights stored channels-last / HWIO
        "w1": 0.1 * jax.random.normal(ks[0], (inplanes, width), jnp.float32),
        "w2": 0.1 * jax.random.normal(ks[1], (3, 3, width, width), jnp.float32),
        "w3": 0.1 * jax.random.normal(
            ks[2], (width, planes * expansion), jnp.float32),
        "bn1": bn_params(ks[3], width),
        "bn2": bn_params(ks[4], width),
        "bn3": bn_params(ks[5], planes * expansion),
    }


if __name__ == "__main__":
    # small shapes consistent with the module: inplanes = planes*expansion so
    # the default (downsample=None, stride=1) residual path is valid.
    batch, planes, spatial = 2, 4, 8
    inplanes = planes * 4                     # 16
    key = jax.random.PRNGKey(0)
    kx, kp = jax.random.split(key)
    x = jax.random.normal(kx, (batch, inplanes, spatial, spatial), jnp.float32)
    params = make_params(kp, inplanes, planes)

    out = qbottleneck_forward(x, params)
    out = jax.block_until_ready(out)

    ref = jnp.transpose(
        reference_forward_nhwc(jnp.transpose(x, (0, 2, 3, 1)), params),
        (0, 3, 1, 2))
    assert out.shape == (batch, inplanes, spatial, spatial), out.shape
    assert jnp.allclose(out, ref, atol=1e-4, rtol=1e-4), "mismatch vs reference"

    print("KERNEL_OK")
</pallas_src>

<mosaic_0001>
module attributes {stable_mosaic.version = 11 : i64} {
  func.func @_qbottleneck_kernel(%arg0: i32, %arg1: memref<1x8x8x16xf32, #tpu.memory_space<vmem>>, %arg2: memref<16x4xf32, #tpu.memory_space<vmem>>, %arg3: memref<1x4xf32, #tpu.memory_space<vmem>>, %arg4: memref<9x4x4xf32, #tpu.memory_space<vmem>>, %arg5: memref<1x4xf32, #tpu.memory_space<vmem>>, %arg6: memref<4x16xf32, #tpu.memory_space<vmem>>, %arg7: memref<1x16xf32, #tpu.memory_space<vmem>>, %arg8: memref<1x8x8x16xf32, #tpu.memory_space<vmem>>, %arg9: memref<10x10x4xf32, #tpu.memory_space<vmem>>) attributes {dimension_semantics = [#tpu.dimension_semantics<parallel>], iteration_bounds = array<i64: 2>, scalar_prefetch = 0 : i64, scratch_operands = 1 : i64, tpu.core_type = #tpu.core_type<tc>, window_params = [{transform_indices = @transform_0, window_bounds = array<i64: 1, 8, 8, 16>}, {pipeline_mode = #tpu.pipeline_mode<synchronous>, transform_indices = @transform_1, window_bounds = array<i64: 16, 4>}, {pipeline_mode = #tpu.pipeline_mode<synchronous>, transform_indices = @transform_2, window_bounds = array<i64: 1, 4>}, {pipeline_mode = #tpu.pipeline_mode<synchronous>, transform_indices = @transform_3, window_bounds = array<i64: 9, 4, 4>}, {pipeline_mode = #tpu.pipeline_mode<synchronous>, transform_indices = @transform_4, window_bounds = array<i64: 1, 4>}, {pipeline_mode = #tpu.pipeline_mode<synchronous>, transform_indices = @transform_5, window_bounds = array<i64: 4, 16>}, {pipeline_mode = #tpu.pipeline_mode<synchronous>, transform_indices = @transform_6, window_bounds = array<i64: 1, 16>}, {transform_indices = @transform_7, window_bounds = array<i64: 1, 8, 8, 16>}]} {
    %cst = arith.constant 0.000000e+00 : f32
    %0 = vector.broadcast %cst : f32 to vector<10x10x4xf32>
    %c0 = arith.constant 0 : index
    %c0_0 = arith.constant 0 : index
    %c0_1 = arith.constant 0 : index
    %1 = vector.load %arg9[%c0, %c0_0, %c0_1] : memref<10x10x4xf32, #tpu.memory_space<vmem>>, vector<10x10x4xf32>
    tpu.vector_store %arg9[%c0, %c0_0, %c0_1], %0 {strides = array<i32>} : memref<10x10x4xf32, #tpu.memory_space<vmem>>, vector<10x10x4xf32>,
    %c0_2 = arith.constant 0 : index
    %c0_3 = arith.constant 0 : index
    %2 = vector.load %arg2[%c0_2, %c0_3] : memref<16x4xf32, #tpu.memory_space<vmem>>, vector<16x4xf32>
    %c0_4 = arith.constant 0 : index
    %c0_5 = arith.constant 0 : index
    %3 = vector.load %arg3[%c0_4, %c0_5] : memref<1x4xf32, #tpu.memory_space<vmem>>, vector<1x4xf32>
    %c0_6 = arith.constant 0 : index
    %c0_7 = arith.constant 0 : index
    %c0_8 = arith.constant 0 : index
    %c0_9 = arith.constant 0 : index
    %4 = vector.load %arg1[%c0_6, %c0_7, %c0_8, %c0_9] : memref<1x8x8x16xf32, #tpu.memory_space<vmem>>, vector<1x8x8x16xf32>
    %5 = vector.shape_cast %4 : vector<1x8x8x16xf32> to vector<8x8x16xf32>
    %6 = vector.shape_cast %5 : vector<8x8x16xf32> to vector<64x16xf32>
    %cst_10 = arith.constant dense<0.000000e+00> : vector<64x4xf32>
    %7 = tpu.matmul %6, %2, %cst_10 {dimension_numbers = #tpu.dot_dimension_numbers<[1], [0], [0], [1], [0, 0, 1, 1], [], []>} : vector<64x16xf32>, vector<16x4xf32>, vector<64x4xf32> -> vector<64x4xf32>
    %8 = vector.broadcast %3 : vector<1x4xf32> to vector<64x4xf32>
    %9 = arith.addf %7, %8 : vector<64x4xf32>
    %cst_11 = arith.constant 0.000000e+00 : f32
    %10 = vector.broadcast %cst_11 : f32 to vector<64x4xf32>
    %11 = arith.maximumf %9, %10 : vector<64x4xf32>
    %12 = vector.shape_cast %11 : vector<64x4xf32> to vector<8x8x4xf32>
    %c1 = arith.constant 1 : index
    %c1_12 = arith.constant 1 : index
    %c0_13 = arith.constant 0 : index
    %13 = vector.load %arg9[%c1, %c1_12, %c0_13] : memref<10x10x4xf32, #tpu.memory_space<vmem>>, vector<8x8x4xf32>
    tpu.vector_store %arg9[%c1, %c1_12, %c0_13], %12 {strides = array<i32>} : memref<10x10x4xf32, #tpu.memory_space<vmem>>, vector<8x8x4xf32>,
    %c0_14 = arith.constant 0 : index
    %c0_15 = arith.constant 0 : index
    %14 = vector.load %arg6[%c0_14, %c0_15] : memref<4x16xf32, #tpu.memory_space<vmem>>, vector<4x16xf32>
    %c0_16 = arith.constant 0 : index
    %c0_17 = arith.constant 0 : index
    %15 = vector.load %arg5[%c0_16, %c0_17] : memref<1x4xf32, #tpu.memory_space<vmem>>, vector<1x4xf32>
    %c0_18 = arith.constant 0 : index
    %c0_19 = arith.constant 0 : index
    %16 = vector.load %arg7[%c0_18, %c0_19] : memref<1x16xf32, #tpu.memory_space<vmem>>, vector<1x16xf32>
    %cst_20 = arith.constant 0.000000e+00 : f32
    %17 = vector.broadcast %cst_20 : f32 to vector<64x4xf32>
    %c0_21 = arith.constant 0 : index
    %c0_22 = arith.constant 0 : index
    %c0_23 = arith.constant 0 : index
    %18 = vector.load %arg9[%c0_21, %c0_22, %c0_23] : memref<10x10x4xf32, #tpu.memory_space<vmem>>, vector<8x8x4xf32>
    %19 = vector.shape_cast %18 : vector<8x8x4xf32> to vector<64x4xf32>
    %c0_24 = arith.constant 0 : index
    %c0_25 = arith.constant 0 : index
    %c0_26 = arith.constant 0 : index
    %20 = vector.load %arg4[%c0_24, %c0_25, %c0_26] : memref<9x4x4xf32, #tpu.memory_space<vmem>>, vector<1x4x4xf32>
    %21 = vector.shape_cast %20 : vector<1x4x4xf32> to vector<4x4xf32>
    %cst_27 = arith.constant dense<0.000000e+00> : vector<64x4xf32>
    %22 = tpu.matmul %19, %21, %cst_27 {dimension_numbers = #tpu.dot_dimension_numbers<[1], [0], [0], [1], [0, 0, 1, 1], [], []>} : vector<64x4xf32>, vector<4x4xf32>, vector<64x4xf32> -> vector<64x4xf32>
    %23 = arith.addf %17, %22 : vector<64x4xf32>
    %c0_28 = arith.constant 0 : index
    %c1_29 = arith.constant 1 : index
    %c0_30 = arith.constant 0 : index
    %24 = vector.load %arg9[%c0_28, %c1_29, %c0_30] : memref<10x10x4xf32, #tpu.memory_space<vmem>>, vector<8x8x4xf32>
    %25 = vector.shape_cast %24 : vector<8x8x4xf32> to vector<64x4xf32>
    %c1_31 = arith.constant 1 : index
    %c0_32 = arith.constant 0 : index
    %c0_33 = arith.constant 0 : index
    %26 = vector.load %arg4[%c1_31, %c0_32, %c0_33] : memref<9x4x4xf32, #tpu.memory_space<vmem>>, vector<1x4x4xf32>
    %27 = vector.shape_cast %26 : vector<1x4x4xf32> to vector<4x4xf32>
    %cst_34 = arith.constant dense<0.000000e+00> : vector<64x4xf32>
    %28 = tpu.matmul %25, %27, %cst_34 {dimension_numbers = #tpu.dot_dimension_numbers<[1], [0], [0], [1], [0, 0, 1, 1], [], []>} : vector<64x4xf32>, vector<4x4xf32>, vector<64x4xf32> -> vector<64x4xf32>
    %29 = arith.addf %23, %28 : vector<64x4xf32>
    %c0_35 = arith.constant 0 : index
    %c2 = arith.constant 2 : index
    %c0_36 = arith.constant 0 : index
    %30 = vector.load %arg9[%c0_35, %c2, %c0_36] : memref<10x10x4xf32, #tpu.memory_space<vmem>>, vector<8x8x4xf32>
    %31 = vector.shape_cast %30 : vector<8x8x4xf32> to vector<64x4xf32>
    %c2_37 = arith.constant 2 : index
    %c0_38 = arith.constant 0 : index
    %c0_39 = arith.constant 0 : index
    %32 = vector.load %arg4[%c2_37, %c0_38, %c0_39] : memref<9x4x4xf32, #tpu.memory_space<vmem>>, vector<1x4x4xf32>
    %33 = vector.shape_cast %32 : vector<1x4x4xf32> to vector<4x4xf32>
    %cst_40 = arith.constant dense<0.000000e+00> : vector<64x4xf32>
    %34 = tpu.matmul %31, %33, %cst_40 {dimension_numbers = #tpu.dot_dimension_numbers<[1], [0], [0], [1], [0, 0, 1, 1], [], []>} : vector<64x4xf32>, vector<4x4xf32>, vector<64x4xf32> -> vector<64x4xf32>
    %35 = arith.addf %29, %34 : vector<64x4xf32>
    %c1_41 = arith.constant 1 : index
    %c0_42 = arith.constant 0 : index
    %c0_43 = arith.constant 0 : index
    %36 = vector.load %arg9[%c1_41, %c0_42, %c0_43] : memref<10x10x4xf32, #tpu.memory_space<vmem>>, vector<8x8x4xf32>
    %37 = vector.shape_cast %36 : vector<8x8x4xf32> to vector<64x4xf32>
    %c3 = arith.constant 3 : index
    %c0_44 = arith.constant 0 : index
    %c0_45 = arith.constant 0 : index
    %38 = vector.load %arg4[%c3, %c0_44, %c0_45] : memref<9x4x4xf32, #tpu.memory_space<vmem>>, vector<1x4x4xf32>
    %39 = vector.shape_cast %38 : vector<1x4x4xf32> to vector<4x4xf32>
    %cst_46 = arith.constant dense<0.000000e+00> : vector<64x4xf32>
    %40 = tpu.matmul %37, %39, %cst_46 {dimension_numbers = #tpu.dot_dimension_numbers<[1], [0], [0], [1], [0, 0, 1, 1], [], []>} : vector<64x4xf32>, vector<4x4xf32>, vector<64x4xf32> -> vector<64x4xf32>
    %41 = arith.addf %35, %40 : vector<64x4xf32>
    %c1_47 = arith.constant 1 : index
    %c1_48 = arith.constant 1 : index
    %c0_49 = arith.constant 0 : index
    %42 = vector.load %arg9[%c1_47, %c1_48, %c0_49] : memref<10x10x4xf32, #tpu.memory_space<vmem>>, vector<8x8x4xf32>
    %43 = vector.shape_cast %42 : vector<8x8x4xf32> to vector<64x4xf32>
    %c4 = arith.constant 4 : index
    %c0_50 = arith.constant 0 : index
    %c0_51 = arith.constant 0 : index
    %44 = vector.load %arg4[%c4, %c0_50, %c0_51] : memref<9x4x4xf32, #tpu.memory_space<vmem>>, vector<1x4x4xf32>
    %45 = vector.shape_cast %44 : vector<1x4x4xf32> to vector<4x4xf32>
    %cst_52 = arith.constant dense<0.000000e+00> : vector<64x4xf32>
    %46 = tpu.matmul %43, %45, %cst_52 {dimension_numbers = #tpu.dot_dimension_numbers<[1], [0], [0], [1], [0, 0, 1, 1], [], []>} : vector<64x4xf32>, vector<4x4xf32>, vector<64x4xf32> -> vector<64x4xf32>
    %47 = arith.addf %41, %46 : vector<64x4xf32>
    %c1_53 = arith.constant 1 : index
    %c2_54 = arith.constant 2 : index
    %c0_55 = arith.constant 0 : index
    %48 = vector.load %arg9[%c1_53, %c2_54, %c0_55] : memref<10x10x4xf32, #tpu.memory_space<vmem>>, vector<8x8x4xf32>
    %49 = vector.shape_cast %48 : vector<8x8x4xf32> to vector<64x4xf32>
    %c5 = arith.constant 5 : index
    %c0_56 = arith.constant 0 : index
    %c0_57 = arith.constant 0 : index
    %50 = vector.load %arg4[%c5, %c0_56, %c0_57] : memref<9x4x4xf32, #tpu.memory_space<vmem>>, vector<1x4x4xf32>
    %51 = vector.shape_cast %50 : vector<1x4x4xf32> to vector<4x4xf32>
    %cst_58 = arith.constant dense<0.000000e+00> : vector<64x4xf32>
    %52 = tpu.matmul %49, %51, %cst_58 {dimension_numbers = #tpu.dot_dimension_numbers<[1], [0], [0], [1], [0, 0, 1, 1], [], []>} : vector<64x4xf32>, vector<4x4xf32>, vector<64x4xf32> -> vector<64x4xf32>
    %53 = arith.addf %47, %52 : vector<64x4xf32>
    %c2_59 = arith.constant 2 : index
    %c0_60 = arith.constant 0 : index
    %c0_61 = arith.constant 0 : index
    %54 = vector.load %arg9[%c2_59, %c0_60, %c0_61] : memref<10x10x4xf32, #tpu.memory_space<vmem>>, vector<8x8x4xf32>
    %55 = vector.shape_cast %54 : vector<8x8x4xf32> to vector<64x4xf32>
    %c6 = arith.constant 6 : index
    %c0_62 = arith.constant 0 : index
    %c0_63 = arith.constant 0 : index
    %56 = vector.load %arg4[%c6, %c0_62, %c0_63] : memref<9x4x4xf32, #tpu.memory_space<vmem>>, vector<1x4x4xf32>
    %57 = vector.shape_cast %56 : vector<1x4x4xf32> to vector<4x4xf32>
    %cst_64 = arith.constant dense<0.000000e+00> : vector<64x4xf32>
    %58 = tpu.matmul %55, %57, %cst_64 {dimension_numbers = #tpu.dot_dimension_numbers<[1], [0], [0], [1], [0, 0, 1, 1], [], []>} : vector<64x4xf32>, vector<4x4xf32>, vector<64x4xf32> -> vector<64x4xf32>
    %59 = arith.addf %53, %58 : vector<64x4xf32>
    %c2_65 = arith.constant 2 : index
    %c1_66 = arith.constant 1 : index
    %c0_67 = arith.constant 0 : index
    %60 = vector.load %arg9[%c2_65, %c1_66, %c0_67] : memref<10x10x4xf32, #tpu.memory_space<vmem>>, vector<8x8x4xf32>
    %61 = vector.shape_cast %60 : vector<8x8x4xf32> to vector<64x4xf32>
    %c7 = arith.constant 7 : index
    %c0_68 = arith.constant 0 : index
    %c0_69 = arith.constant 0 : index
    %62 = vector.load %arg4[%c7, %c0_68, %c0_69] : memref<9x4x4xf32, #tpu.memory_space<vmem>>, vector<1x4x4xf32>
    %63 = vector.shape_cast %62 : vector<1x4x4xf32> to vector<4x4xf32>
    %cst_70 = arith.constant dense<0.000000e+00> : vector<64x4xf32>
    %64 = tpu.matmul %61, %63, %cst_70 {dimension_numbers = #tpu.dot_dimension_numbers<[1], [0], [0], [1], [0, 0, 1, 1], [], []>} : vector<64x4xf32>, vector<4x4xf32>, vector<64x4xf32> -> vector<64x4xf32>
    %65 = arith.addf %59, %64 : vector<64x4xf32>
    %c2_71 = arith.constant 2 : index
    %c2_72 = arith.constant 2 : index
    %c0_73 = arith.constant 0 : index
    %66 = vector.load %arg9[%c2_71, %c2_72, %c0_73] : memref<10x10x4xf32, #tpu.memory_space<vmem>>, vector<8x8x4xf32>
    %67 = vector.shape_cast %66 : vector<8x8x4xf32> to vector<64x4xf32>
    %c8 = arith.constant 8 : index
    %c0_74 = arith.constant 0 : index
    %c0_75 = arith.constant 0 : index
    %68 = vector.load %arg4[%c8, %c0_74, %c0_75] : memref<9x4x4xf32, #tpu.memory_space<vmem>>, vector<1x4x4xf32>
    %69 = vector.shape_cast %68 : vector<1x4x4xf32> to vector<4x4xf32>
    %cst_76 = arith.constant dense<0.000000e+00> : vector<64x4xf32>
    %70 = tpu.matmul %67, %69, %cst_76 {dimension_numbers = #tpu.dot_dimension_numbers<[1], [0], [0], [1], [0, 0, 1, 1], [], []>} : vector<64x4xf32>, vector<4x4xf32>, vector<64x4xf32> -> vector<64x4xf32>
    %71 = arith.addf %65, %70 : vector<64x4xf32>
    %72 = vector.broadcast %15 : vector<1x4xf32> to vector<64x4xf32>
    %73 = arith.addf %71, %72 : vector<64x4xf32>
    %cst_77 = arith.constant 0.000000e+00 : f32
    %74 = vector.broadcast %cst_77 : f32 to vector<64x4xf32>
    %75 = arith.maximumf %73, %74 : vector<64x4xf32>
    %c0_78 = arith.constant 0 : index
    %c0_79 = arith.constant 0 : index
    %c0_80 = arith.constant 0 : index
    %c0_81 = arith.constant 0 : index
    %76 = vector.load %arg1[%c0_78, %c0_79, %c0_80, %c0_81] : memref<1x8x8x16xf32, #tpu.memory_space<vmem>>, vector<1x8x8x16xf32>
    %77 = vector.shape_cast %76 : vector<1x8x8x16xf32> to vector<8x8x16xf32>
    %78 = vector.shape_cast %77 : vector<8x8x16xf32> to vector<64x16xf32>
    %cst_82 = arith.constant dense<0.000000e+00> : vector<64x16xf32>
    %79 = tpu.matmul %75, %14, %cst_82 {dimension_numbers = #tpu.dot_dimension_numbers<[1], [0], [0], [1], [0, 0, 1, 1], [], []>} : vector<64x4xf32>, vector<4x16xf32>, vector<64x16xf32> -> vector<64x16xf32>
    %80 = vector.broadcast %16 : vector<1x16xf32> to vector<64x16xf32>
    %81 = arith.addf %79, %80 : vector<64x16xf32>
    %82 = arith.addf %81, %78 : vector<64x16xf32>
    %cst_83 = arith.constant 0.000000e+00 : f32
    %83 = vector.broadcast %cst_83 : f32 to vector<64x16xf32>
    %84 = arith.maximumf %82, %83 : vector<64x16xf32>
    %85 = vector.shape_cast %84 : vector<64x16xf32> to vector<8x8x16xf32>
    %c0_84 = arith.constant 0 : index
    %c0_85 = arith.constant 0 : index
    %c0_86 = arith.constant 0 : index
    %c0_87 = arith.constant 0 : index
    %86 = vector.load %arg8[%c0_84, %c0_85, %c0_86, %c0_87] : memref<1x8x8x16xf32, #tpu.memory_space<vmem>>, vector<1x8x8x16xf32>
    %87 = vector.shape_cast %86 : vector<1x8x8x16xf32> to vector<8x8x16xf32>
    %88 = vector.shape_cast %85 : vector<8x8x16xf32> to vector<1x8x8x16xf32>
    tpu.vector_store %arg8[%c0_84, %c0_85, %c0_86, %c0_87], %88 {strides = array<i32>} : memref<1x8x8x16xf32, #tpu.memory_space<vmem>>, vector<1x8x8x16xf32>,
    return
  }
  func.func @transform_0(%arg0: i32) -> (i32, i32, i32, i32) {
    %c0_i32 = arith.constant 0 : i32
    %c0_i32_0 = arith.constant 0 : i32
    %c0_i32_1 = arith.constant 0 : i32
    %c0_i32_2 = arith.constant 0 : i32
    return %arg0, %c0_i32, %c0_i32_0, %c0_i32_1 : i32, i32, i32, i32
  }
  func.func @transform_1(%arg0: i32) -> (i32, i32) {
    %c0_i32 = arith.constant 0 : i32
    %c0_i32_0 = arith.constant 0 : i32
    %c0_i32_1 = arith.constant 0 : i32
    return %c0_i32, %c0_i32_0 : i32, i32
  }
  func.func @transform_2(%arg0: i32) -> (i32, i32) {
    %c0_i32 = arith.constant 0 : i32
    %c0_i32_0 = arith.constant 0 : i32
    %c0_i32_1 = arith.constant 0 : i32
    return %c0_i32, %c0_i32_0 : i32, i32
  }
  func.func @transform_3(%arg0: i32) -> (i32, i32, i32) {
    %c0_i32 = arith.constant 0 : i32
    %c0_i32_0 = arith.constant 0 : i32
    %c0_i32_1 = arith.constant 0 : i32
    %c0_i32_2 = arith.constant 0 : i32
    return %c0_i32, %c0_i32_0, %c0_i32_1 : i32, i32, i32
  }
  func.func @transform_4(%arg0: i32) -> (i32, i32) {
    %c0_i32 = arith.constant 0 : i32
    %c0_i32_0 = arith.constant 0 : i32
    %c0_i32_1 = arith.constant 0 : i32
    return %c0_i32, %c0_i32_0 : i32, i32
  }
  func.func @transform_5(%arg0: i32) -> (i32, i32) {
    %c0_i32 = arith.constant 0 : i32
    %c0_i32_0 = arith.constant 0 : i32
    %c0_i32_1 = arith.constant 0 : i32
    return %c0_i32, %c0_i32_0 : i32, i32
  }
  func.func @transform_6(%arg0: i32) -> (i32, i32) {
    %c0_i32 = arith.constant 0 : i32
    %c0_i32_0 = arith.constant 0 : i32
    %c0_i32_1 = arith.constant 0 : i32
    return %c0_i32, %c0_i32_0 : i32, i32
  }
  func.func @transform_7(%arg0: i32) -> (i32, i32, i32, i32) {
    %c0_i32 = arith.constant 0 : i32
    %c0_i32_0 = arith.constant 0 : i32
    %c0_i32_1 = arith.constant 0 : i32
    %c0_i32_2 = arith.constant 0 : i32
    return %arg0, %c0_i32, %c0_i32_0, %c0_i32_1 : i32, i32, i32, i32
  }
}

</mosaic_0001>

<llo_original>
// kernel: tpu_custom_call.1
$region0: #{tpu_custom_call.1}
  #allocation0 [shape = 'u32[]', space=smem, size = 0x4, offset = 0x4, fixed_abs, tag = 'smem constant byte address 0x4 - core index']
  #allocation1 [shape = 'u32[144,128]{1,0:T(1,128)}', space=vmem, size = 0x12000, scoped, tag = 'internal scratch']
  #allocation2 [shape = 'f32[10,10,4]{2,1,0:T(8,128)}', space=vmem, size = 0x14000, scoped, tag = 'scratch operand']
  %s0 = inlined_call_operand.hbm [shape: f32[2,8,8,16], index: 0, kind: input, shape index: {}]
  %s1 = inlined_call_operand.vmem [shape: f32[16,4], index: 1, kind: input, shape index: {}]
  %s2 = inlined_call_operand.vmem [shape: f32[1,4], index: 2, kind: input, shape index: {}]
  %s3 = inlined_call_operand.vmem [shape: f32[9,4,4], index: 3, kind: input, shape index: {}]
  %s4 = inlined_call_operand.vmem [shape: f32[1,4], index: 4, kind: input, shape index: {}]
  %s5 = inlined_call_operand.vmem [shape: f32[4,16], index: 5, kind: input, shape index: {}]
  %s6 = inlined_call_operand.vmem [shape: f32[1,16], index: 6, kind: input, shape index: {}]
  %s7 = inlined_call_operand.hbm [shape: f32[2,8,8,16], index: 7, kind: output, shape index: {}]
  %s8 = sld [smem:[#allocation0]]
  $region65: #{tpu_custom_call.1} parent=0
    _
  %s10 = ssub.s32 1, %s8
  %s11 = scalar_select 0, %s10, %s8
  $region1: #{tpu_custom_call.1} parent=0
    #allocation3 [shape = 'u8[65536]{0}', space=vmem, size = 0x10000, scoped, tag = 'input window, operand 0']
    #allocation4 [shape = 's32[2]{0}', space=sflag, size = 0x8, scoped, tag = 'scoped memory for tpu_custom_call.1']
    #allocation5 [shape = 's32[2]{0}', space=sflag, size = 0x8, scoped, tag = 'scoped memory for tpu_custom_call.1']
    #allocation6 [shape = 'u8[65536]{0}', space=vmem, size = 0x10000, scoped, tag = 'output window, operand 0']
    %12 = vsyncpa [#allocation4], 0
    %s13 = scalar_lea.sflag [#allocation4], 1
    %14 = vsyncpa %s13, 0
    %15 = vsyncpa [#allocation5], 0
    %s16 = scalar_lea.sflag [#allocation5], 1
    %17 = vsyncpa %s16, 0
    loop: start=0, step=1, limit=4
    $region2: #{tpu_custom_call.1} parent=1 // loop_pre_header
      _
    $region3: #{tpu_custom_call.1} parent=1 // loop_header
      %s19 = sphi 0, %s23
      %p20 = scmp.ge.s32.totalorder %s19, 4
      %s29 = sphi 0, %s31
      %s32 = sphi 0, %s29
      %s33 = sphi 0, %s32
      %s49 = sphi 0, %s33
      %s53 = sphi 0, %s53
      %s55 = sphi 0, %s53
      %s56 = sphi 0, %s55
      %s70 = sphi 0, %s56
      %s74 = sphi 0, %s74
      %s76 = sphi 0, %s74
      %s77 = sphi 0, %s76
      %s91 = sphi 0, %s77
      %s95 = sphi 0, %s95
      %s97 = sphi 0, %s95
      %s98 = sphi 0, %s97
      %s112 = sphi 0, %s98
      %s116 = sphi 0, %s116
      %s118 = sphi 0, %s116
      %s119 = sphi 0, %s118
      %s133 = sphi 0, %s119
      %s137 = sphi 0, %s137
      %s139 = sphi 0, %s137
      %s140 = sphi 0, %s139
      %s154 = sphi 0, %s140
      %s158 = sphi 0, %s158
      %s160 = sphi 0, %s158
      %s161 = sphi 0, %s160
      %s175 = sphi 0, %s161
      %s181 = sphi 0, %s183
      %s184 = sphi 0, %s181
      %s185 = sphi 0, %s184
      %s201 = sphi 0, %s185
    $region4: #{tpu_custom_call.1} parent=1 // loop_header_branch
      %22 = sbr.rel (%p20) target = $region8
    $region5: #{tpu_custom_call.1} parent=1 // loop_body
      %s24 = ssub.s32 %s19, 1
      %s25 = ssub.s32 %s19, 2
      %s26 = sadd.s32 %s19, 1
      %s27 = ssub.s32 %s19, %s26
      %p28 = scmp.eq.s32.totalorder %s27, 0
      %s30 = sadd.s32 %s29, 1
      %s31 = scalar_select %p28, %s29, %s30
      %p34 = pneg %p28
      %p35 = scmp.eq.s32.totalorder %s19, 1
      %p36 = por %p34, %p35
      %p37 = scmp.ne.s32.totalorder %s29, %s32
      %p38 = scmp.eq.s32.totalorder %s19, 0
      %p39 = por %p37, %p38
      %p40 = scmp.ne.s32.totalorder %s29, %s32
      %p41 = scmp.eq.s32.totalorder %s24, 1
      %p42 = por %p40, %p41
      %p43 = scmp.ne.s32.totalorder %s32, %s33
      %p44 = scmp.eq.s32.totalorder %s24, 0
      %p45 = por %p43, %p44
      %p46 = scmp.ne.s32.totalorder %s32, %s33
      %p47 = scmp.eq.s32.totalorder %s25, 1
      %p48 = por %p46, %p47
      %p50 = scmp.ne.s32.totalorder %s33, %s49
      %p51 = scmp.eq.s32.totalorder %s25, 0
      %p52 = por %p50, %p51
      %s54 = sadd.s32 %s53, 1
      %p57 = scmp.eq.s32.totalorder %s19, 1
      %p58 = scmp.ne.s32.totalorder %s53, %s55
      %p59 = scmp.eq.s32.totalorder %s19, 0
      %p60 = por %p58, %p59
      %p61 = scmp.ne.s32.totalorder %s53, %s55
      %p62 = scmp.eq.s32.totalorder %s24, 1
      %p63 = por %p61, %p62
      %p64 = scmp.ne.s32.totalorder %s55, %s56
      %p65 = scmp.eq.s32.totalorder %s24, 0
      %p66 = por %p64, %p65
      %p67 = scmp.ne.s32.totalorder %s55, %s56
      %p68 = scmp.eq.s32.totalorder %s25, 1
      %p69 = por %p67, %p68
      %p71 = scmp.ne.s32.totalorder %s56, %s70
      %p72 = scmp.eq.s32.totalorder %s25, 0
      %p73 = por %p71, %p72
      %s75 = sadd.s32 %s74, 1
      %p78 = scmp.eq.s32.totalorder %s19, 1
      %p79 = scmp.ne.s32.totalorder %s74, %s76
      %p80 = scmp.eq.s32.totalorder %s19, 0
      %p81 = por %p79, %p80
      %p82 = scmp.ne.s32.totalorder %s74, %s76
      %p83 = scmp.eq.s32.totalorder %s24, 1
      %p84 = por %p82, %p83
      %p85 = scmp.ne.s32.totalorder %s76, %s77
      %p86 = scmp.eq.s32.totalorder %s24, 0
      %p87 = por %p85, %p86
      %p88 = scmp.ne.s32.totalorder %s76, %s77
      %p89 = scmp.eq.s32.totalorder %s25, 1
      %p90 = por %p88, %p89
      %p92 = scmp.ne.s32.totalorder %s77, %s91
      %p93 = scmp.eq.s32.totalorder %s25, 0
      %p94 = por %p92, %p93
      %s96 = sadd.s32 %s95, 1
      %p99 = scmp.eq.s32.totalorder %s19, 1
      %p100 = scmp.ne.s32.totalorder %s95, %s97
      %p101 = scmp.eq.s32.totalorder %s19, 0
      %p102 = por %p100, %p101
      %p103 = scmp.ne.s32.totalorder %s95, %s97
      %p104 = scmp.eq.s32.totalorder %s24, 1
      %p105 = por %p103, %p104
      %p106 = scmp.ne.s32.totalorder %s97, %s98
      %p107 = scmp.eq.s32.totalorder %s24, 0
      %p108 = por %p106, %p107
      %p109 = scmp.ne.s32.totalorder %s97, %s98
      %p110 = scmp.eq.s32.totalorder %s25, 1
      %p111 = por %p109, %p110
      %p113 = scmp.ne.s32.totalorder %s98, %s112
      %p114 = scmp.eq.s32.totalorder %s25, 0
      %p115 = por %p113, %p114
      %s117 = sadd.s32 %s116, 1
      %p120 = scmp.eq.s32.totalorder %s19, 1
      %p121 = scmp.ne.s32.totalorder %s116, %s118
      %p122 = scmp.eq.s32.totalorder %s19, 0
      %p123 = por %p121, %p122
      %p124 = scmp.ne.s32.totalorder %s116, %s118
      %p125 = scmp.eq.s32.totalorder %s24, 1
      %p126 = por %p124, %p125
      %p127 = scmp.ne.s32.totalorder %s118, %s119
      %p128 = scmp.eq.s32.totalorder %s24, 0
      %p129 = por %p127, %p128
      %p130 = scmp.ne.s32.totalorder %s118, %s119
      %p131 = scmp.eq.s32.totalorder %s25, 1
      %p132 = por %p130, %p131
      %p134 = scmp.ne.s32.totalorder %s119, %s133
      %p135 = scmp.eq.s32.totalorder %s25, 0
      %p136 = por %p134, %p135
      %s138 = sadd.s32 %s137, 1
      %p141 = scmp.eq.s32.totalorder %s19, 1
      %p142 = scmp.ne.s32.totalorder %s137, %s139
      %p143 = scmp.eq.s32.totalorder %s19, 0
      %p144 = por %p142, %p143
      %p145 = scmp.ne.s32.totalorder %s137, %s139
      %p146 = scmp.eq.s32.totalorder %s24, 1
      %p147 = por %p145, %p146
      %p148 = scmp.ne.s32.totalorder %s139, %s140
      %p149 = scmp.eq.s32.totalorder %s24, 0
      %p150 = por %p148, %p149
      %p151 = scmp.ne.s32.totalorder %s139, %s140
      %p152 = scmp.eq.s32.totalorder %s25, 1
      %p153 = por %p151, %p152
      %p155 = scmp.ne.s32.totalorder %s140, %s154
      %p156 = scmp.eq.s32.totalorder %s25, 0
      %p157 = por %p155, %p156
      %s159 = sadd.s32 %s158, 1
      %p162 = scmp.eq.s32.totalorder %s19, 1
      %p163 = scmp.ne.s32.totalorder %s158, %s160
      %p164 = scmp.eq.s32.totalorder %s19, 0
      %p165 = por %p163, %p164
      %p166 = scmp.ne.s32.totalorder %s158, %s160
      %p167 = scmp.eq.s32.totalorder %s24, 1
      %p168 = por %p166, %p167
      %p169 = scmp.ne.s32.totalorder %s160, %s161
      %p170 = scmp.eq.s32.totalorder %s24, 0
      %p171 = por %p169, %p170
      %p172 = scmp.ne.s32.totalorder %s160, %s161
      %p173 = scmp.eq.s32.totalorder %s25, 1
      %p174 = por %p172, %p173
      %p176 = scmp.ne.s32.totalorder %s161, %s175
      %p177 = scmp.eq.s32.totalorder %s25, 0
      %p178 = por %p176, %p177
      %s179 = ssub.s32 %s19, %s26
      %p180 = scmp.eq.s32.totalorder %s179, 0
      %s182 = sadd.s32 %s181, 1
      %s183 = scalar_select %p180, %s181, %s182
      %p186 = pneg %p180
      %p187 = scmp.eq.s32.totalorder %s19, 1
      %p188 = por %p186, %p187
      %p189 = scmp.ne.s32.totalorder %s181, %s184
      %p190 = scmp.eq.s32.totalorder %s19, 0
      %p191 = por %p189, %p190
      %p192 = scmp.ne.s32.totalorder %s181, %s184
      %p193 = scmp.eq.s32.totalorder %s24, 1
      %p194 = por %p192, %p193
      %p195 = scmp.ne.s32.totalorder %s184, %s185
      %p196 = scmp.eq.s32.totalorder %s24, 0
      %p197 = por %p195, %p196
      %p198 = scmp.ne.s32.totalorder %s184, %s185
      %p199 = scmp.eq.s32.totalorder %s25, 1
      %p200 = por %p198, %p199
      %p202 = scmp.ne.s32.totalorder %s185, %s201
      %p203 = scmp.eq.s32.totalorder %s25, 0
      %p204 = por %p202, %p203
      %p205 = scmp.le.s32.totalorder 1, %s19
      %p206 = scmp.lt.s32.totalorder %s19, 3
      %p207 = pnand %p205, %p206
      %p208 = pneg %p207
      // Predicated region
      $region9: #{tpu_custom_call.1} parent=5 // pred_check
        _
      $region10: #{tpu_custom_call.1} parent=5 // pred_check_branch
        %210 = sbr.rel (%p207) target = $region12
      $region11: #{tpu_custom_call.1} parent=5 // pred_region
        %s211 = ssub.s32 %s19, 1
        // Predicated region
        $region13: #{tpu_custom_call.1} parent=11 // pred_check
          %p212 = pneg %p66
        $region14: #{tpu_custom_call.1} parent=11 // pred_check_branch
          %214 = sbr.rel (%p212) target = $region16
        $region15: #{tpu_custom_call.1} parent=11 // pred_region
          _
        $region16: #{tpu_custom_call.1} parent=11 // pred_fallthru
          _
        // Predicated region
        $region17: #{tpu_custom_call.1} parent=11 // pred_check
          %p215 = pneg %p87
        $region18: #{tpu_custom_call.1} parent=11 // pred_check_branch
          %217 = sbr.rel (%p215) target = $region20
        $region19: #{tpu_custom_call.1} parent=11 // pred_region
          _
        $region20: #{tpu_custom_call.1} parent=11 // pred_fallthru
          _
        // Predicated region
        $region21: #{tpu_custom_call.1} parent=11 // pred_check
          %p218 = pneg %p108
        $region22: #{tpu_custom_call.1} parent=11 // pred_check_branch
          %220 = sbr.rel (%p218) target = $region24
        $region23: #{tpu_custom_call.1} parent=11 // pred_region
          _
        $region24: #{tpu_custom_call.1} parent=11 // pred_fallthru
          _
        // Predicated region
        $region25: #{tpu_custom_call.1} parent=11 // pred_check
          %p221 = pneg %p129
        $region26: #{tpu_custom_call.1} parent=11 // pred_check_branch
          %223 = sbr.rel (%p221) target = $region28
        $region27: #{tpu_custom_call.1} parent=11 // pred_region
          _
        $region28: #{tpu_custom_call.1} parent=11 // pred_fallthru
          _
        // Predicated region
        $region29: #{tpu_custom_call.1} parent=11 // pred_check
          %p224 = pneg %p150
        $region30: #{tpu_custom_call.1} parent=11 // pred_check_branch
          %226 = sbr.rel (%p224) target = $region32
        $region31: #{tpu_custom_call.1} parent=11 // pred_region
          _
        $region32: #{tpu_custom_call.1} parent=11 // pred_fallthru
          _
        // Predicated region
        $region33: #{tpu_custom_call.1} parent=11 // pred_check
          %p227 = pneg %p171
        $region34: #{tpu_custom_call.1} parent=11 // pred_check_branch
          %229 = sbr.rel (%p227) target = $region36
        $region35: #{tpu_custom_call.1} parent=11 // pred_region
          _
        $region36: #{tpu_custom_call.1} parent=11 // pred_fallthru
          _
      $region12: #{tpu_custom_call.1} parent=5 // pred_fallthru
        _
      %p230 = scmp.lt.s32.totalorder %s19, 2
      // Predicated region
      $region37: #{tpu_custom_call.1} parent=5 // pred_check
        %p231 = pneg %p230
      $region38: #{tpu_custom_call.1} parent=5 // pred_check_branch
        %233 = sbr.rel (%p231) target = $region40
      $region39: #{tpu_custom_call.1} parent=5 // pred_region
        // Predicated region
        $region41: #{tpu_custom_call.1} parent=39 // pred_check
          %p234 = pneg %p39
        $region42: #{tpu_custom_call.1} parent=39 // pred_check_branch
          %236 = sbr.rel (%p234) target = $region44
        $region43: #{tpu_custom_call.1} parent=39 // pred_region
          %s237 = sand.u32 %s29, 1
          %s238 = scalar_lea.sflag [#allocation4], %s237
          %s239 = sand.u32 %s29, 1
          %s240 = smul.addr %s239, 64
          %s241 = scalar_lea.vmem [#allocation3], %s240
          %s243 = ssub.s32 1024, 1024
          %244 = vsyncadd %s238, %s243
          %s245 = smul.addr %s19, 8
          %s246 = smul.addr %s245, 128
          %s247 = scalar_lea.hbm %s0, %s246
          %s248 = sshll.u32 %s241, 4
          %s249 = int_to_ptr.vmem [resolvable:$true] %s248
          %254 = dma.hbm_to_vmem [thread:$0]  %s247, 1024, %s249, %s238, 128, 128, 8
        $region44: #{tpu_custom_call.1} parent=39 // pred_fallthru
          _
      $region40: #{tpu_custom_call.1} parent=5 // pred_fallthru
        _
      %p255 = scmp.le.s32.totalorder 1, %s19
      %p256 = scmp.lt.s32.totalorder %s19, 3
      %p257 = pnand %p255, %p256
      %p258 = pneg %p257
      // Predicated region
      $region45: #{tpu_custom_call.1} parent=5 // pred_check
        _
      $region46: #{tpu_custom_call.1} parent=5 // pred_check_branch
        %260 = sbr.rel (%p257) target = $region48
      $region47: #{tpu_custom_call.1} parent=5 // pred_region
        %s261 = ssub.s32 %s19, 1
        %s262 = sand.u32 %s32, 1
        %s263 = scalar_lea.sflag [#allocation4], %s262
        %s264 = sand.u32 %s32, 1
        %s265 = smul.addr %s264, 64
        %s266 = scalar_lea.vmem [#allocation3], %s265
        // Predicated region
        $region49: #{tpu_custom_call.1} parent=47 // pred_check
          %p267 = pneg %p45
        $region50: #{tpu_custom_call.1} parent=47 // pred_check_branch
          %269 = sbr.rel (%p267) target = $region52
        $region51: #{tpu_custom_call.1} parent=47 // pred_region
          %270 = dma.done %s263, 1024
        $region52: #{tpu_custom_call.1} parent=47 // pred_fallthru
          _
        %s271 = sand.u32 %s32, 1
        %s272 = scalar_lea.sflag [#allocation4], %s271
        %s273 = sand.u32 %s32, 1
        %s274 = smul.addr %s273, 64
        %s275 = scalar_lea.vmem [#allocation3], %s274
        %p276 = pneg %p45
        %p277 = pneg %p42
        %p278 = pneg %p66
        %p279 = pneg %p63
        %p280 = pneg %p87
        %p281 = pneg %p84
        %p282 = pneg %p108
        %p283 = pneg %p105
        %p284 = pneg %p129
        %p285 = pneg %p126
        %p286 = pneg %p150
        %p287 = pneg %p147
        %p288 = pneg %p171
        %p289 = pneg %p168
        %p290 = pneg %p197
        %p291 = pneg %p194
        %s292 = sand.u32 %s184, 1
        %s293 = scalar_lea.sflag [#allocation5], %s292
        %s294 = sand.u32 %s184, 1
        %s295 = smul.addr %s294, 64
        %s296 = scalar_lea.vmem [#allocation6], %s295
        %vm297 = vcmask 31744
        %298 = vst.msk [vmem:[#allocation2] sm:$0xff] %vm297, 0.0
        %vm299 = vcmask 25600
        %300 = vst.msk [vmem:[#allocation2 + $0x8] sm:$0x3] %vm299, 0.0
        %301 = vst.msk [vmem:[#allocation2 + $0x10] sm:$0xff] %vm297, 0.0
        %302 = vst.msk [vmem:[#allocation2 + $0x18] sm:$0x3] %vm299, 0.0
        %303 = vst.msk [vmem:[#allocation2 + $0x20] sm:$0xff] %vm297, 0.0
        %304 = vst.msk [vmem:[#allocation2 + $0x28] sm:$0x3] %vm299, 0.0
        %305 = vst.msk [vmem:[#allocation2 + $0x30] sm:$0xff] %vm297, 0.0
        %306 = vst.msk [vmem:[#allocation2 + $0x38] sm:$0x3] %vm299, 0.0
        %307 = vst.msk [vmem:[#allocation2 + $0x40] sm:$0xff] %vm297, 0.0
        %308 = vst.msk [vmem:[#allocation2 + $0x48] sm:$0x3] %vm299, 0.0
        %309 = vst.msk [vmem:[#allocation2 + $0x50] sm:$0xff] %vm297, 0.0
        %310 = vst.msk [vmem:[#allocation2 + $0x58] sm:$0x3] %vm299, 0.0
        %311 = vst.msk [vmem:[#allocation2 + $0x60] sm:$0xff] %vm297, 0.0
        %312 = vst.msk [vmem:[#allocation2 + $0x68] sm:$0x3] %vm299, 0.0
        %313 = vst.msk [vmem:[#allocation2 + $0x70] sm:$0xff] %vm297, 0.0
        %314 = vst.msk [vmem:[#allocation2 + $0x78] sm:$0x3] %vm299, 0.0
        %315 = vst.msk [vmem:[#allocation2 + $0x80] sm:$0xff] %vm297, 0.0
        %316 = vst.msk [vmem:[#allocation2 + $0x88] sm:$0x3] %vm299, 0.0
        %317 = vst.msk [vmem:[#allocation2 + $0x90] sm:$0xff] %vm297, 0.0
        %318 = vst.msk [vmem:[#allocation2 + $0x98] sm:$0x3] %vm299, 0.0
        %v319 = vld [vmem:[%s1] sm:$0xff]
        %v320 = vld [vmem:[%s1 + $0x8] sm:$0xff]
        %v321 = vld [vmem:[%s2] sm:$0x1]
        %v322 = vld [vmem:[%s266] sm:$0xff]
        %v323 = vld [vmem:[%s266 + $0x8] sm:$0xff]
        %v324 = vld [vmem:[%s266 + $0x10] sm:$0xff]
        %v325 = vld [vmem:[%s266 + $0x18] sm:$0xff]
        %v326 = vld [vmem:[%s266 + $0x20] sm:$0xff]
        %v327 = vld [vmem:[%s266 + $0x28] sm:$0xff]
        %v328 = vld [vmem:[%s266 + $0x30] sm:$0xff]
        %v329 = vld [vmem:[%s266 + $0x38] sm:$0xff]
        %v331 = vlaneseq
        %v332 = vshrl.u32 %v331, 7
        %v333 = vsub.s32 0, %v332
        %v334 = vrot.slane %v321, %v333
        %vm336 = vcmask 130048
        %v338 = vsel %vm336, %v322, 0
        %v341 = vsel %vm336, %v323, 0
        %v344 = vsel %vm336, %v324, 0
        %v347 = vsel %vm336, %v325, 0
        %v350 = vsel %vm336, %v326, 0
        %v353 = vsel %vm336, %v327, 0
        %v356 = vsel %vm336, %v328, 0
        %v359 = vsel %vm336, %v329, 0
        %361 = vmatprep.subr.mxu0 0.0
        %362 = vmatpush1.msra.mxu0 0.0
        %363 = vmatprep.subr.mxu0 0.0
        %364 = vmatpush1.msra.mxu0 0.0
        %365 = vmatprep.subr.mxu0 0.0
        %366 = vmatpush1.msra.mxu0 0.0
        %367 = vmatprep.subr.mxu0 0.0
        %368 = vmatpush1.msra.mxu0 0.0
        %369 = vmatprep.subr.mxu0 0.0
        %370 = vmatpush1.msra.mxu0 0.0
        %371 = vmatprep.subr.mxu0 0.0
        %372 = vmatpush1.msra.mxu0 0.0
        %373 = vmatprep.subr.mxu0 0.0
        %374 = vmatpush1.msra.mxu0 0.0
        %375 = vmatprep.subr.mxu0 0.0
        %376 = vmatpush1.msra.mxu0 0.0
        %377 = vmatprep.subr.mxu0 0.0
        %378 = vmatpush1.msra.mxu0 0.0
        %379 = vmatprep.subr.mxu0 0.0
        %380 = vmatpush1.msra.mxu0 0.0
        %381 = vmatprep.subr.mxu0 0.0
        %382 = vmatpush1.msra.mxu0 0.0
        %383 = vmatprep.subr.mxu0 0.0
        %384 = vmatpush1.msra.mxu0 0.0
        %385 = vmatprep.subr.mxu0 0.0
        %386 = vmatpush1.msra.mxu0 0.0
        %387 = vmatprep.subr.mxu0 0.0
        %388 = vmatpush1.msra.mxu0 0.0
        %389 = vmatprep.subr.mxu0 0.0
        %390 = vmatpush1.msra.mxu0 %v320
        %391 = vmatprep.subr.mxu0 0.0
        %392 = vmatpush1.msra.mxu0 %v319
        %393 = vmatprep.subr.mxu0 0.0
        %394 = vmatpush2.msra.mxu0 0.0
        %395 = vmatprep.subr.mxu0 0.0
        %396 = vmatpush2.msra.mxu0 0.0
        %397 = vmatprep.subr.mxu0 0.0
        %398 = vmatpush2.msra.mxu0 0.0
        %399 = vmatprep.subr.mxu0 0.0
        %400 = vmatpush2.msra.mxu0 0.0
        %401 = vmatprep.subr.mxu0 0.0
        %402 = vmatpush2.msra.mxu0 0.0
        %403 = vmatprep.subr.mxu0 0.0
        %404 = vmatpush2.msra.mxu0 0.0
        %405 = vmatprep.subr.mxu0 0.0
        %406 = vmatpush2.msra.mxu0 0.0
        %407 = vmatprep.subr.mxu0 0.0
        %408 = vmatpush2.msra.mxu0 0.0
        %409 = vmatprep.subr.mxu0 0.0
        %410 = vmatpush2.msra.mxu0 0.0
        %411 = vmatprep.subr.mxu0 0.0
        %412 = vmatpush2.msra.mxu0 0.0
        %413 = vmatprep.subr.mxu0 0.0
        %414 = vmatpush2.msra.mxu0 0.0
        %415 = vmatprep.subr.mxu0 0.0
        %416 = vmatpush2.msra.mxu0 0.0
        %417 = vmatprep.subr.mxu0 0.0
        %418 = vmatpush2.msra.mxu0 0.0
        %419 = vmatprep.subr.mxu0 0.0
        %420 = vmatpush2.msra.mxu0 0.0
        %421 = vmatprep.subr.mxu0 0.0
        %422 = vmatpush2.msra.mxu0 0.0
        %423 = vmatprep.subr.mxu0 0.0
        %424 = vmatpush2.msra.mxu0 0.0
        %425 = vmatprep.mubr.f32.mxu0 0.0
        %426 = vmatmul.mubr.f32.gmra.mxu0 %v338
        %v427 = vpop.f32.mrf.mxu0
        %v428 = vadd.f32 %v334, %v427
        %v429 = vpop.f32.mrf.mxu0
        %430 = vmatprep.mubr.f32.mxu0 0.0
        %431 = vmatmul.mubr.f32.gmra.mxu0 %v341
        %v432 = vpop.f32.mrf.mxu0
        %v433 = vadd.f32 %v334, %v432
        %v434 = vpop.f32.mrf.mxu0
        %435 = vmatprep.mubr.f32.mxu0 0.0
        %436 = vmatmul.mubr.f32.gmra.mxu0 %v344
        %v437 = vpop.f32.mrf.mxu0
        %v438 = vadd.f32 %v334, %v437
        %v439 = vpop.f32.mrf.mxu0
        %440 = vmatprep.mubr.f32.mxu0 0.0
        %441 = vmatmul.mubr.f32.gmra.mxu0 %v347
        %v442 = vpop.f32.mrf.mxu0
        %v443 = vadd.f32 %v334, %v442
        %v444 = vpop.f32.mrf.mxu0
        %445 = vmatprep.mubr.f32.mxu0 0.0
        %446 = vmatmul.mubr.f32.gmra.mxu0 %v350
        %v447 = vpop.f32.mrf.mxu0
        %v448 = vadd.f32 %v334, %v447
        %v449 = vpop.f32.mrf.mxu0
        %450 = vmatprep.mubr.f32.mxu0 0.0
        %451 = vmatmul.mubr.f32.gmra.mxu0 %v353
        %v452 = vpop.f32.mrf.mxu0
        %v453 = vadd.f32 %v334, %v452
        %v454 = vpop.f32.mrf.mxu0
        %455 = vmatprep.mubr.f32.mxu0 0.0
        %456 = vmatmul.mubr.f32.gmra.mxu0 %v356
        %v457 = vpop.f32.mrf.mxu0
        %v458 = vadd.f32 %v334, %v457
        %v459 = vpop.f32.mrf.mxu0
        %460 = vmatprep.mubr.f32.mxu0 0.0
        %461 = vmatmul.mubr.f32.gmra.mxu0 %v359
        %v462 = vpop.f32.mrf.mxu0
        %v463 = vadd.f32 %v334, %v462
        %v464 = vpop.f32.mrf.mxu0
        %465 = vdwg.mxu0
        %v466 = vmax.f32 %v428, 0.0
        %v467 = vmax.f32 %v433, 0.0
        %v468 = vmax.f32 %v438, 0.0
        %v469 = vmax.f32 %v443, 0.0
        %v470 = vmax.f32 %v448, 0.0
        %v471 = vmax.f32 %v453, 0.0
        %v472 = vmax.f32 %v458, 0.0
        %v473 = vmax.f32 %v463, 0.0
        %s474 = scalar_lea.vmem [#allocation2], 16
        %475 = vst.msk [vmem:[%s474 + $0x1] sm:$0xff] %vm297, %v466
        %476 = vst.msk [vmem:[%s474 + $0x11] sm:$0xff] %vm297, %v467
        %477 = vst.msk [vmem:[%s474 + $0x21] sm:$0xff] %vm297, %v468
        %478 = vst.msk [vmem:[%s474 + $0x31] sm:$0xff] %vm297, %v469
        %479 = vst.msk [vmem:[%s474 + $0x41] sm:$0xff] %vm297, %v470
        %480 = vst.msk [vmem:[%s474 + $0x51] sm:$0xff] %vm297, %v471
        %481 = vst.msk [vmem:[%s474 + $0x61] sm:$0xff] %vm297, %v472
        %482 = vst.msk [vmem:[%s474 + $0x71] sm:$0xff] %vm297, %v473
        %v483 = vld [vmem:[%s5] sm:$0xf]
        %v484 = vld [vmem:[%s4] sm:$0x1]
        %v485 = vld [vmem:[%s6] sm:$0x1]
        %v486 = vld [vmem:[#allocation2] sm:$0xff]
        %v487 = vld [vmem:[#allocation2 + $0x10] sm:$0xff]
        %v488 = vld [vmem:[#allocation2 + $0x20] sm:$0xff]
        %v489 = vld [vmem:[#allocation2 + $0x30] sm:$0xff]
        %v490 = vld [vmem:[#allocation2 + $0x40] sm:$0xff]
        %v491 = vld [vmem:[#allocation2 + $0x50] sm:$0xff]
        %v492 = vld [vmem:[#allocation2 + $0x60] sm:$0xff]
        %v493 = vld [vmem:[#allocation2 + $0x70] sm:$0xff]
        %v494 = vld [vmem:[%s3] sm:$0xf]
        %v495 = vld [vmem:[#allocation2 + $0x1] sm:$0xff]
        %v496 = vld [vmem:[#allocation2 + $0x11] sm:$0xff]
        %v497 = vld [vmem:[#allocation2 + $0x21] sm:$0xff]
        %v498 = vld [vmem:[#allocation2 + $0x31] sm:$0xff]
        %v499 = vld [vmem:[#allocation2 + $0x41] sm:$0xff]
        %v500 = vld [vmem:[#allocation2 + $0x51] sm:$0xff]
        %v501 = vld [vmem:[#allocation2 + $0x61] sm:$0xff]
        %v502 = vld [vmem:[#allocation2 + $0x71] sm:$0xff]
        %s503 = scalar_lea.vmem %s3, 4
        %v504 = vld [vmem:[%s503] sm:$0xf]
        %v506 = vsel %vm297, %v495, 0
        %v509 = vsel %vm297, %v496, 0
        %v512 = vsel %vm297, %v497, 0
        %v515 = vsel %vm297, %v498, 0
        %v518 = vsel %vm297, %v499, 0
        %v521 = vsel %vm297, %v500, 0
        %v524 = vsel %vm297, %v501, 0
        %v527 = vsel %vm297, %v502, 0
        %vm529 = vcmask 1043456
        %v531 = vsel %vm529, %v504, 0
        %533 = vmatprep.subr.mxu0 0.0
        %534 = vmatpush1.msra.mxu0 0.0
        %535 = vmatprep.subr.mxu0 0.0
        %536 = vmatpush1.msra.mxu0 0.0
        %537 = vmatprep.subr.mxu0 0.0
        %538 = vmatpush1.msra.mxu0 0.0
        %539 = vmatprep.subr.mxu0 0.0
        %540 = vmatpush1.msra.mxu0 0.0
        %541 = vmatprep.subr.mxu0 0.0
        %542 = vmatpush1.msra.mxu0 0.0
        %543 = vmatprep.subr.mxu0 0.0
        %544 = vmatpush1.msra.mxu0 0.0
        %545 = vmatprep.subr.mxu0 0.0
        %546 = vmatpush1.msra.mxu0 0.0
        %547 = vmatprep.subr.mxu0 0.0
        %548 = vmatpush1.msra.mxu0 0.0
        %549 = vmatprep.subr.mxu0 0.0
        %550 = vmatpush1.msra.mxu0 0.0
        %551 = vmatprep.subr.mxu0 0.0
        %552 = vmatpush1.msra.mxu0 0.0
        %553 = vmatprep.subr.mxu0 0.0
        %554 = vmatpush1.msra.mxu0 0.0
        %555 = vmatprep.subr.mxu0 0.0
        %556 = vmatpush1.msra.mxu0 0.0
        %557 = vmatprep.subr.mxu0 0.0
        %558 = vmatpush1.msra.mxu0 0.0
        %559 = vmatprep.subr.mxu0 0.0
        %560 = vmatpush1.msra.mxu0 0.0
        %561 = vmatprep.subr.mxu0 0.0
        %562 = vmatpush1.msra.mxu0 0.0
        %563 = vmatprep.subr.mxu0 0.0
        %564 = vmatpush1.msra.mxu0 %v531
        %565 = vmatprep.subr.mxu0 0.0
        %566 = vmatpush2.msra.mxu0 0.0
        %567 = vmatprep.subr.mxu0 0.0
        %568 = vmatpush2.msra.mxu0 0.0
        %569 = vmatprep.subr.mxu0 0.0
        %570 = vmatpush2.msra.mxu0 0.0
        %571 = vmatprep.subr.mxu0 0.0
        %572 = vmatpush2.msra.mxu0 0.0
        %573 = vmatprep.subr.mxu0 0.0
        %574 = vmatpush2.msra.mxu0 0.0
        %575 = vmatprep.subr.mxu0 0.0
        %576 = vmatpush2.msra.mxu0 0.0
        %577 = vmatprep.subr.mxu0 0.0
        %578 = vmatpush2.msra.mxu0 0.0
        %579 = vmatprep.subr.mxu0 0.0
        %580 = vmatpush2.msra.mxu0 0.0
        %581 = vmatprep.subr.mxu0 0.0
        %582 = vmatpush2.msra.mxu0 0.0
        %583 = vmatprep.subr.mxu0 0.0
        %584 = vmatpush2.msra.mxu0 0.0
        %585 = vmatprep.subr.mxu0 0.0
        %586 = vmatpush2.msra.mxu0 0.0
        %587 = vmatprep.subr.mxu0 0.0
        %588 = vmatpush2.msra.mxu0 0.0
        %589 = vmatprep.subr.mxu0 0.0
        %590 = vmatpush2.msra.mxu0 0.0
        %591 = vmatprep.subr.mxu0 0.0
        %592 = vmatpush2.msra.mxu0 0.0
        %593 = vmatprep.subr.mxu0 0.0
        %594 = vmatpush2.msra.mxu0 0.0
        %595 = vmatprep.subr.mxu0 0.0
        %596 = vmatpush2.msra.mxu0 0.0
        %597 = vmatprep.mubr.f32.mxu0 0.0
        %598 = vmatmul.mubr.f32.gmra.mxu0 %v506
        %v599 = vpop.f32.mrf.mxu0
        %v600 = vadd.f32 0.0, %v599
        %v601 = vpop.f32.mrf.mxu0
        %602 = vmatprep.mubr.f32.mxu0 0.0
        %603 = vmatmul.mubr.f32.gmra.mxu0 %v509
        %v604 = vpop.f32.mrf.mxu0
        %v605 = vadd.f32 0.0, %v604
        %v606 = vpop.f32.mrf.mxu0
        %607 = vmatprep.mubr.f32.mxu0 0.0
        %608 = vmatmul.mubr.f32.gmra.mxu0 %v512
        %v609 = vpop.f32.mrf.mxu0
        %v610 = vadd.f32 0.0, %v609
        %v611 = vpop.f32.mrf.mxu0
        %612 = vmatprep.mubr.f32.mxu0 0.0
        %613 = vmatmul.mubr.f32.gmra.mxu0 %v515
        %v614 = vpop.f32.mrf.mxu0
        %v615 = vadd.f32 0.0, %v614
        %v616 = vpop.f32.mrf.mxu0
        %617 = vmatprep.mubr.f32.mxu0 0.0
        %618 = vmatmul.mubr.f32.gmra.mxu0 %v518
        %v619 = vpop.f32.mrf.mxu0
        %v620 = vadd.f32 0.0, %v619
        %v621 = vpop.f32.mrf.mxu0
        %622 = vmatprep.mubr.f32.mxu0 0.0
        %623 = vmatmul.mubr.f32.gmra.mxu0 %v521
        %v624 = vpop.f32.mrf.mxu0
        %v625 = vadd.f32 0.0, %v624
        %v626 = vpop.f32.mrf.mxu0
        %627 = vmatprep.mubr.f32.mxu0 0.0
        %628 = vmatmul.mubr.f32.gmra.mxu0 %v524
        %v629 = vpop.f32.mrf.mxu0
        %v630 = vadd.f32 0.0, %v629
        %v631 = vpop.f32.mrf.mxu0
        %632 = vmatprep.mubr.f32.mxu0 0.0
        %633 = vmatmul.mubr.f32.gmra.mxu0 %v527
        %v634 = vpop.f32.mrf.mxu0
        %v635 = vadd.f32 0.0, %v634
        %v636 = vpop.f32.mrf.mxu0
        %637 = vdwg.mxu0
        %v639 = vsel %vm297, %v486, 0
        %v642 = vsel %vm297, %v487, 0
        %v645 = vsel %vm297, %v488, 0
        %v648 = vsel %vm297, %v489, 0
        %v651 = vsel %vm297, %v490, 0
        %v654 = vsel %vm297, %v491, 0
        %v657 = vsel %vm297, %v492, 0
        %v660 = vsel %vm297, %v493, 0
        %v663 = vsel %vm529, %v494, 0
        %665 = vmatprep.subr.mxu0 0.0
        %666 = vmatpush1.msra.mxu0 0.0
        %667 = vmatprep.subr.mxu0 0.0
        %668 = vmatpush1.msra.mxu0 0.0
        %669 = vmatprep.subr.mxu0 0.0
        %670 = vmatpush1.msra.mxu0 0.0
        %671 = vmatprep.subr.mxu0 0.0
        %672 = vmatpush1.msra.mxu0 0.0
        %673 = vmatprep.subr.mxu0 0.0
        %674 = vmatpush1.msra.mxu0 0.0
        %675 = vmatprep.subr.mxu0 0.0
        %676 = vmatpush1.msra.mxu0 0.0
        %677 = vmatprep.subr.mxu0 0.0
        %678 = vmatpush1.msra.mxu0 0.0
        %679 = vmatprep.subr.mxu0 0.0
        %680 = vmatpush1.msra.mxu0 0.0
        %681 = vmatprep.subr.mxu0 0.0
        %682 = vmatpush1.msra.mxu0 0.0
        %683 = vmatprep.subr.mxu0 0.0
        %684 = vmatpush1.msra.mxu0 0.0
        %685 = vmatprep.subr.mxu0 0.0
        %686 = vmatpush1.msra.mxu0 0.0
        %687 = vmatprep.subr.mxu0 0.0
        %688 = vmatpush1.msra.mxu0 0.0
        %689 = vmatprep.subr.mxu0 0.0
        %690 = vmatpush1.msra.mxu0 0.0
        %691 = vmatprep.subr.mxu0 0.0
        %692 = vmatpush1.msra.mxu0 0.0
        %693 = vmatprep.subr.mxu0 0.0
        %694 = vmatpush1.msra.mxu0 0.0
        %695 = vmatprep.subr.mxu0 0.0
        %696 = vmatpush1.msra.mxu0 %v663
        %697 = vmatprep.subr.mxu0 0.0
        %698 = vmatpush2.msra.mxu0 0.0
        %699 = vmatprep.subr.mxu0 0.0
        %700 = vmatpush2.msra.mxu0 0.0
        %701 = vmatprep.subr.mxu0 0.0
        %702 = vmatpush2.msra.mxu0 0.0
        %703 = vmatprep.subr.mxu0 0.0
        %704 = vmatpush2.msra.mxu0 0.0
        %705 = vmatprep.subr.mxu0 0.0
        %706 = vmatpush2.msra.mxu0 0.0
        %707 = vmatprep.subr.mxu0 0.0
        %708 = vmatpush2.msra.mxu0 0.0
        %709 = vmatprep.subr.mxu0 0.0
        %710 = vmatpush2.msra.mxu0 0.0
        %711 = vmatprep.subr.mxu0 0.0
        %712 = vmatpush2.msra.mxu0 0.0
        %713 = vmatprep.subr.mxu0 0.0
        %714 = vmatpush2.msra.mxu0 0.0
        %715 = vmatprep.subr.mxu0 0.0
        %716 = vmatpush2.msra.mxu0 0.0
        %717 = vmatprep.subr.mxu0 0.0
        %718 = vmatpush2.msra.mxu0 0.0
        %719 = vmatprep.subr.mxu0 0.0
        %720 = vmatpush2.msra.mxu0 0.0
        %721 = vmatprep.subr.mxu0 0.0
        %722 = vmatpush2.msra.mxu0 0.0
        %723 = vmatprep.subr.mxu0 0.0
        %724 = vmatpush2.msra.mxu0 0.0
        %725 = vmatprep.subr.mxu0 0.0
        %726 = vmatpush2.msra.mxu0 0.0
        %727 = vmatprep.subr.mxu0 0.0
        %728 = vmatpush2.msra.mxu0 0.0
        %729 = vmatprep.mubr.f32.mxu0 0.0
        %730 = vmatmul.mubr.f32.gmra.mxu0 %v639
        %v731 = vpop.f32.mrf.mxu0
        %v732 = vadd.f32 %v600, %v731
        %v733 = vpop.f32.mrf.mxu0
        %734 = vmatprep.mubr.f32.mxu0 0.0
        %735 = vmatmul.mubr.f32.gmra.mxu0 %v642
        %v736 = vpop.f32.mrf.mxu0
        %v737 = vadd.f32 %v605, %v736
        %v738 = vpop.f32.mrf.mxu0
        %739 = vmatprep.mubr.f32.mxu0 0.0
        %740 = vmatmul.mubr.f32.gmra.mxu0 %v645
        %v741 = vpop.f32.mrf.mxu0
        %v742 = vadd.f32 %v610, %v741
        %v743 = vpop.f32.mrf.mxu0
        %744 = vmatprep.mubr.f32.mxu0 0.0
        %745 = vmatmul.mubr.f32.gmra.mxu0 %v648
        %v746 = vpop.f32.mrf.mxu0
        %v747 = vadd.f32 %v615, %v746
        %v748 = vpop.f32.mrf.mxu0
        %749 = vmatprep.mubr.f32.mxu0 0.0
        %750 = vmatmul.mubr.f32.gmra.mxu0 %v651
        %v751 = vpop.f32.mrf.mxu0
        %v752 = vadd.f32 %v620, %v751
        %v753 = vpop.f32.mrf.mxu0
        %754 = vmatprep.mubr.f32.mxu0 0.0
        %755 = vmatmul.mubr.f32.gmra.mxu0 %v654
        %v756 = vpop.f32.mrf.mxu0
        %v757 = vadd.f32 %v625, %v756
        %v758 = vpop.f32.mrf.mxu0
        %759 = vmatprep.mubr.f32.mxu0 0.0
        %760 = vmatmul.mubr.f32.gmra.mxu0 %v657
        %v761 = vpop.f32.mrf.mxu0
        %v762 = vadd.f32 %v630, %v761
        %v763 = vpop.f32.mrf.mxu0
        %764 = vmatprep.mubr.f32.mxu0 0.0
        %765 = vmatmul.mubr.f32.gmra.mxu0 %v660
        %v766 = vpop.f32.mrf.mxu0
        %v767 = vadd.f32 %v635, %v766
        %v768 = vpop.f32.mrf.mxu0
        %769 = vdwg.mxu0
        %v770 = vld [vmem:[#allocation2 + $0x2] sm:$0xff]
        %v771 = vld [vmem:[#allocation2 + $0x12] sm:$0xff]
        %v772 = vld [vmem:[#allocation2 + $0x22] sm:$0xff]
        %v773 = vld [vmem:[#allocation2 + $0x32] sm:$0xff]
        %v774 = vld [vmem:[#allocation2 + $0x42] sm:$0xff]
        %v775 = vld [vmem:[#allocation2 + $0x52] sm:$0xff]
        %v776 = vld [vmem:[#allocation2 + $0x62] sm:$0xff]
        %v777 = vld [vmem:[#allocation2 + $0x72] sm:$0xff]
        %s778 = scalar_lea.vmem %s3, 8
        %v779 = vld [vmem:[%s778] sm:$0xf]
        %v781 = vsel %vm297, %v770, 0
        %v784 = vsel %vm297, %v771, 0
        %v787 = vsel %vm297, %v772, 0
        %v790 = vsel %vm297, %v773, 0
        %v793 = vsel %vm297, %v774, 0
        %v796 = vsel %vm297, %v775, 0
        %v799 = vsel %vm297, %v776, 0
        %v802 = vsel %vm297, %v777, 0
        %v805 = vsel %vm529, %v779, 0
        %807 = vmatprep.subr.mxu0 0.0
        %808 = vmatpush1.msra.mxu0 0.0
        %809 = vmatprep.subr.mxu0 0.0
        %810 = vmatpush1.msra.mxu0 0.0
        %811 = vmatprep.subr.mxu0 0.0
        %812 = vmatpush1.msra.mxu0 0.0
        %813 = vmatprep.subr.mxu0 0.0
        %814 = vmatpush1.msra.mxu0 0.0
        %815 = vmatprep.subr.mxu0 0.0
        %816 = vmatpush1.msra.mxu0 0.0
        %817 = vmatprep.subr.mxu0 0.0
        %818 = vmatpush1.msra.mxu0 0.0
        %819 = vmatprep.subr.mxu0 0.0
        %820 = vmatpush1.msra.mxu0 0.0
        %821 = vmatprep.subr.mxu0 0.0
        %822 = vmatpush1.msra.mxu0 0.0
        %823 = vmatprep.subr.mxu0 0.0
        %824 = vmatpush1.msra.mxu0 0.0
        %825 = vmatprep.subr.mxu0 0.0
        %826 = vmatpush1.msra.mxu0 0.0
        %827 = vmatprep.subr.mxu0 0.0
        %828 = vmatpush1.msra.mxu0 0.0
        %829 = vmatprep.subr.mxu0 0.0
        %830 = vmatpush1.msra.mxu0 0.0
        %831 = vmatprep.subr.mxu0 0.0
        %832 = vmatpush1.msra.mxu0 0.0
        %833 = vmatprep.subr.mxu0 0.0
        %834 = vmatpush1.msra.mxu0 0.0
        %835 = vmatprep.subr.mxu0 0.0
        %836 = vmatpush1.msra.mxu0 0.0
        %837 = vmatprep.subr.mxu0 0.0
        %838 = vmatpush1.msra.mxu0 %v805
        %839 = vmatprep.subr.mxu0 0.0
        %840 = vmatpush2.msra.mxu0 0.0
        %841 = vmatprep.subr.mxu0 0.0
        %842 = vmatpush2.msra.mxu0 0.0
        %843 = vmatprep.subr.mxu0 0.0
        %844 = vmatpush2.msra.mxu0 0.0
        %845 = vmatprep.subr.mxu0 0.0
        %846 = vmatpush2.msra.mxu0 0.0
        %847 = vmatprep.subr.mxu0 0.0
        %848 = vmatpush2.msra.mxu0 0.0
        %849 = vmatprep.subr.mxu0 0.0
        %850 = vmatpush2.msra.mxu0 0.0
        %851 = vmatprep.subr.mxu0 0.0
        %852 = vmatpush2.msra.mxu0 0.0
        %853 = vmatprep.subr.mxu0 0.0
        %854 = vmatpush2.msra.mxu0 0.0
        %855 = vmatprep.subr.mxu0 0.0
        %856 = vmatpush2.msra.mxu0 0.0
        %857 = vmatprep.subr.mxu0 0.0
        %858 = vmatpush2.msra.mxu0 0.0
        %859 = vmatprep.subr.mxu0 0.0
        %860 = vmatpush2.msra.mxu0 0.0
        %861 = vmatprep.subr.mxu0 0.0
        %862 = vmatpush2.msra.mxu0 0.0
        %863 = vmatprep.subr.mxu0 0.0
        %864 = vmatpush2.msra.mxu0 0.0
        %865 = vmatprep.subr.mxu0 0.0
        %866 = vmatpush2.msra.mxu0 0.0
        %867 = vmatprep.subr.mxu0 0.0
        %868 = vmatpush2.msra.mxu0 0.0
        %869 = vmatprep.subr.mxu0 0.0
        %870 = vmatpush2.msra.mxu0 0.0
        %871 = vmatprep.mubr.f32.mxu0 0.0
        %872 = vmatmul.mubr.f32.gmra.mxu0 %v781
        %v873 = vpop.f32.mrf.mxu0
        %v874 = vadd.f32 0.0, %v873
        %v875 = vpop.f32.mrf.mxu0
        %876 = vmatprep.mubr.f32.mxu0 0.0
        %877 = vmatmul.mubr.f32.gmra.mxu0 %v784
        %v878 = vpop.f32.mrf.mxu0
        %v879 = vadd.f32 0.0, %v878
        %v880 = vpop.f32.mrf.mxu0
        %881 = vmatprep.mubr.f32.mxu0 0.0
        %882 = vmatmul.mubr.f32.gmra.mxu0 %v787
        %v883 = vpop.f32.mrf.mxu0
        %v884 = vadd.f32 0.0, %v883
        %v885 = vpop.f32.mrf.mxu0
        %886 = vmatprep.mubr.f32.mxu0 0.0
        %887 = vmatmul.mubr.f32.gmra.mxu0 %v790
        %v888 = vpop.f32.mrf.mxu0
        %v889 = vadd.f32 0.0, %v888
        %v890 = vpop.f32.mrf.mxu0
        %891 = vmatprep.mubr.f32.mxu0 0.0
        %892 = vmatmul.mubr.f32.gmra.mxu0 %v793
        %v893 = vpop.f32.mrf.mxu0
        %v894 = vadd.f32 0.0, %v893
        %v895 = vpop.f32.mrf.mxu0
        %896 = vmatprep.mubr.f32.mxu0 0.0
        %897 = vmatmul.mubr.f32.gmra.mxu0 %v796
        %v898 = vpop.f32.mrf.mxu0
        %v899 = vadd.f32 0.0, %v898
        %v900 = vpop.f32.mrf.mxu0
        %901 = vmatprep.mubr.f32.mxu0 0.0
        %902 = vmatmul.mubr.f32.gmra.mxu0 %v799
        %v903 = vpop.f32.mrf.mxu0
        %v904 = vadd.f32 0.0, %v903
        %v905 = vpop.f32.mrf.mxu0
        %906 = vmatprep.mubr.f32.mxu0 0.0
        %907 = vmatmul.mubr.f32.gmra.mxu0 %v802
        %v908 = vpop.f32.mrf.mxu0
        %v909 = vadd.f32 0.0, %v908
        %v910 = vpop.f32.mrf.mxu0
        %911 = vdwg.mxu0
        %v912 = vadd.f32 %v732, %v874
        %v913 = vadd.f32 %v737, %v879
        %v914 = vadd.f32 %v742, %v884
        %v915 = vadd.f32 %v747, %v889
        %v916 = vadd.f32 %v752, %v894
        %v917 = vadd.f32 %v757, %v899
        %v918 = vadd.f32 %v762, %v904
        %v919 = vadd.f32 %v767, %v909
        %v920 = vld [vmem:[%s474] sm:$0xff]
        %v921 = vld [vmem:[%s474 + $0x10] sm:$0xff]
        %v922 = vld [vmem:[%s474 + $0x20] sm:$0xff]
        %v923 = vld [vmem:[%s474 + $0x30] sm:$0xff]
        %v924 = vld [vmem:[%s474 + $0x40] sm:$0xff]
        %v925 = vld [vmem:[%s474 + $0x50] sm:$0xff]
        %v926 = vld [vmem:[%s474 + $0x60] sm:$0xff]
        %v927 = vld [vmem:[%s474 + $0x70] sm:$0xff]
        %s928 = scalar_lea.vmem %s3, 12
        %v929 = vld [vmem:[%s928] sm:$0xf]
        %v931 = vsel %vm297, %v920, 0
        %v934 = vsel %vm297, %v921, 0
        %v937 = vsel %vm297, %v922, 0
        %v940 = vsel %vm297, %v923, 0
        %v943 = vsel %vm297, %v924, 0
        %v946 = vsel %vm297, %v925, 0
        %v949 = vsel %vm297, %v926, 0
        %v952 = vsel %vm297, %v927, 0
        %v955 = vsel %vm529, %v929, 0
        %957 = vmatprep.subr.mxu0 0.0
        %958 = vmatpush1.msra.mxu0 0.0
        %959 = vmatprep.subr.mxu0 0.0
        %960 = vmatpush1.msra.mxu0 0.0
        %961 = vmatprep.subr.mxu0 0.0
        %962 = vmatpush1.msra.mxu0 0.0
        %963 = vmatprep.subr.mxu0 0.0
        %964 = vmatpush1.msra.mxu0 0.0
        %965 = vmatprep.subr.mxu0 0.0
        %966 = vmatpush1.msra.mxu0 0.0
        %967 = vmatprep.subr.mxu0 0.0
        %968 = vmatpush1.msra.mxu0 0.0
        %969 = vmatprep.subr.mxu0 0.0
        %970 = vmatpush1.msra.mxu0 0.0
        %971 = vmatprep.subr.mxu0 0.0
        %972 = vmatpush1.msra.mxu0 0.0
        %973 = vmatprep.subr.mxu0 0.0
        %974 = vmatpush1.msra.mxu0 0.0
        %975 = vmatprep.subr.mxu0 0.0
        %976 = vmatpush1.msra.mxu0 0.0
        %977 = vmatprep.subr.mxu0 0.0
        %978 = vmatpush1.msra.mxu0 0.0
        %979 = vmatprep.subr.mxu0 0.0
        %980 = vmatpush1.msra.mxu0 0.0
        %981 = vmatprep.subr.mxu0 0.0
        %982 = vmatpush1.msra.mxu0 0.0
        %983 = vmatprep.subr.mxu0 0.0
        %984 = vmatpush1.msra.mxu0 0.0
        %985 = vmatprep.subr.mxu0 0.0
        %986 = vmatpush1.msra.mxu0 0.0
        %987 = vmatprep.subr.mxu0 0.0
        %988 = vmatpush1.msra.mxu0 %v955
        %989 = vmatprep.subr.mxu0 0.0
        %990 = vmatpush2.msra.mxu0 0.0
        %991 = vmatprep.subr.mxu0 0.0
        %992 = vmatpush2.msra.mxu0 0.0
        %993 = vmatprep.subr.mxu0 0.0
        %994 = vmatpush2.msra.mxu0 0.0
        %995 = vmatprep.subr.mxu0 0.0
        %996 = vmatpush2.msra.mxu0 0.0
        %997 = vmatprep.subr.mxu0 0.0
        %998 = vmatpush2.msra.mxu0 0.0
        %999 = vmatprep.subr.mxu0 0.0
        %1000 = vmatpush2.msra.mxu0 0.0
        %1001 = vmatprep.subr.mxu0 0.0
        %1002 = vmatpush2.msra.mxu0 0.0
        %1003 = vmatprep.subr.mxu0 0.0
        %1004 = vmatpush2.msra.mxu0 0.0
        %1005 = vmatprep.subr.mxu0 0.0
        %1006 = vmatpush2.msra.mxu0 0.0
        %1007 = vmatprep.subr.mxu0 0.0
        %1008 = vmatpush2.msra.mxu0 0.0
        %1009 = vmatprep.subr.mxu0 0.0
        %1010 = vmatpush2.msra.mxu0 0.0
        %1011 = vmatprep.subr.mxu0 0.0
        %1012 = vmatpush2.msra.mxu0 0.0
        %1013 = vmatprep.subr.mxu0 0.0
        %1014 = vmatpush2.msra.mxu0 0.0
        %1015 = vmatprep.subr.mxu0 0.0
        %1016 = vmatpush2.msra.mxu0 0.0
        %1017 = vmatprep.subr.mxu0 0.0
        %1018 = vmatpush2.msra.mxu0 0.0
        %1019 = vmatprep.subr.mxu0 0.0
        %1020 = vmatpush2.msra.mxu0 0.0
        %1021 = vmatprep.mubr.f32.mxu0 0.0
        %1022 = vmatmul.mubr.f32.gmra.mxu0 %v931
        %v1023 = vpop.f32.mrf.mxu0
        %v1024 = vadd.f32 0.0, %v1023
        %v1025 = vpop.f32.mrf.mxu0
        %1026 = vmatprep.mubr.f32.mxu0 0.0
        %1027 = vmatmul.mubr.f32.gmra.mxu0 %v934
        %v1028 = vpop.f32.mrf.mxu0
        %v1029 = vadd.f32 0.0, %v1028
        %v1030 = vpop.f32.mrf.mxu0
        %1031 = vmatprep.mubr.f32.mxu0 0.0
        %1032 = vmatmul.mubr.f32.gmra.mxu0 %v937
        %v1033 = vpop.f32.mrf.mxu0
        %v1034 = vadd.f32 0.0, %v1033
        %v1035 = vpop.f32.mrf.mxu0
        %1036 = vmatprep.mubr.f32.mxu0 0.0
        %1037 = vmatmul.mubr.f32.gmra.mxu0 %v940
        %v1038 = vpop.f32.mrf.mxu0
        %v1039 = vadd.f32 0.0, %v1038
        %v1040 = vpop.f32.mrf.mxu0
        %1041 = vmatprep.mubr.f32.mxu0 0.0
        %1042 = vmatmul.mubr.f32.gmra.mxu0 %v943
        %v1043 = vpop.f32.mrf.mxu0
        %v1044 = vadd.f32 0.0, %v1043
        %v1045 = vpop.f32.mrf.mxu0
        %1046 = vmatprep.mubr.f32.mxu0 0.0
        %1047 = vmatmul.mubr.f32.gmra.mxu0 %v946
        %v1048 = vpop.f32.mrf.mxu0
        %v1049 = vadd.f32 0.0, %v1048
        %v1050 = vpop.f32.mrf.mxu0
        %1051 = vmatprep.mubr.f32.mxu0 0.0
        %1052 = vmatmul.mubr.f32.gmra.mxu0 %v949
        %v1053 = vpop.f32.mrf.mxu0
        %v1054 = vadd.f32 0.0, %v1053
        %v1055 = vpop.f32.mrf.mxu0
        %1056 = vmatprep.mubr.f32.mxu0 0.0
        %1057 = vmatmul.mubr.f32.gmra.mxu0 %v952
        %v1058 = vpop.f32.mrf.mxu0
        %v1059 = vadd.f32 0.0, %v1058
        %v1060 = vpop.f32.mrf.mxu0
        %1061 = vdwg.mxu0
        %v1062 = vadd.f32 %v912, %v1024
        %v1063 = vadd.f32 %v913, %v1029
        %v1064 = vadd.f32 %v914, %v1034
        %v1065 = vadd.f32 %v915, %v1039
        %v1066 = vadd.f32 %v916, %v1044
        %v1067 = vadd.f32 %v917, %v1049
        %v1068 = vadd.f32 %v918, %v1054
        %v1069 = vadd.f32 %v919, %v1059
        %v1070 = vld [vmem:[%s474 + $0x1] sm:$0xff]
        %v1071 = vld [vmem:[%s474 + $0x11] sm:$0xff]
        %v1072 = vld [vmem:[%s474 + $0x21] sm:$0xff]
        %v1073 = vld [vmem:[%s474 + $0x31] sm:$0xff]
        %v1074 = vld [vmem:[%s474 + $0x41] sm:$0xff]
        %v1075 = vld [vmem:[%s474 + $0x51] sm:$0xff]
        %v1076 = vld [vmem:[%s474 + $0x61] sm:$0xff]
        %v1077 = vld [vmem:[%s474 + $0x71] sm:$0xff]
        %s1078 = scalar_lea.vmem %s3, 16
        %v1079 = vld [vmem:[%s1078] sm:$0xf]
        %v1081 = vsel %vm297, %v1070, 0
        %v1084 = vsel %vm297, %v1071, 0
        %v1087 = vsel %vm297, %v1072, 0
        %v1090 = vsel %vm297, %v1073, 0
        %v1093 = vsel %vm297, %v1074, 0
        %v1096 = vsel %vm297, %v1075, 0
        %v1099 = vsel %vm297, %v1076, 0
        %v1102 = vsel %vm297, %v1077, 0
        %v1105 = vsel %vm529, %v1079, 0
        %1107 = vmatprep.subr.mxu0 0.0
        %1108 = vmatpush1.msra.mxu0 0.0
        %1109 = vmatprep.subr.mxu0 0.0
        %1110 = vmatpush1.msra.mxu0 0.0
        %1111 = vmatprep.subr.mxu0 0.0
        %1112 = vmatpush1.msra.mxu0 0.0
        %1113 = vmatprep.subr.mxu0 0.0
        %1114 = vmatpush1.msra.mxu0 0.0
        %1115 = vmatprep.subr.mxu0 0.0
        %1116 = vmatpush1.msra.mxu0 0.0
        %1117 = vmatprep.subr.mxu0 0.0
        %1118 = vmatpush1.msra.mxu0 0.0
        %1119 = vmatprep.subr.mxu0 0.0
        %1120 = vmatpush1.msra.mxu0 0.0
        %1121 = vmatprep.subr.mxu0 0.0
        %1122 = vmatpush1.msra.mxu0 0.0
        %1123 = vmatprep.subr.mxu0 0.0
        %1124 = vmatpush1.msra.mxu0 0.0
        %1125 = vmatprep.subr.mxu0 0.0
        %1126 = vmatpush1.msra.mxu0 0.0
        %1127 = vmatprep.subr.mxu0 0.0
        %1128 = vmatpush1.msra.mxu0 0.0
        %1129 = vmatprep.subr.mxu0 0.0
        %1130 = vmatpush1.msra.mxu0 0.0
        %1131 = vmatprep.subr.mxu0 0.0
        %1132 = vmatpush1.msra.mxu0 0.0
        %1133 = vmatprep.subr.mxu0 0.0
        %1134 = vmatpush1.msra.mxu0 0.0
        %1135 = vmatprep.subr.mxu0 0.0
        %1136 = vmatpush1.msra.mxu0 0.0
        %1137 = vmatprep.subr.mxu0 0.0
        %1138 = vmatpush1.msra.mxu0 %v1105
        %1139 = vmatprep.subr.mxu0 0.0
        %1140 = vmatpush2.msra.mxu0 0.0
        %1141 = vmatprep.subr.mxu0 0.0
        %1142 = vmatpush2.msra.mxu0 0.0
        %1143 = vmatprep.subr.mxu0 0.0
        %1144 = vmatpush2.msra.mxu0 0.0
        %1145 = vmatprep.subr.mxu0 0.0
        %1146 = vmatpush2.msra.mxu0 0.0
        %1147 = vmatprep.subr.mxu0 0.0
        %1148 = vmatpush2.msra.mxu0 0.0
        %1149 = vmatprep.subr.mxu0 0.0
        %1150 = vmatpush2.msra.mxu0 0.0
        %1151 = vmatprep.subr.mxu0 0.0
        %1152 = vmatpush2.msra.mxu0 0.0
        %1153 = vmatprep.subr.mxu0 0.0
        %1154 = vmatpush2.msra.mxu0 0.0
        %1155 = vmatprep.subr.mxu0 0.0
        %1156 = vmatpush2.msra.mxu0 0.0
        %1157 = vmatprep.subr.mxu0 0.0
        %1158 = vmatpush2.msra.mxu0 0.0
        %1159 = vmatprep.subr.mxu0 0.0
        %1160 = vmatpush2.msra.mxu0 0.0
        %1161 = vmatprep.subr.mxu0 0.0
        %1162 = vmatpush2.msra.mxu0 0.0
        %1163 = vmatprep.subr.mxu0 0.0
        %1164 = vmatpush2.msra.mxu0 0.0
        %1165 = vmatprep.subr.mxu0 0.0
        %1166 = vmatpush2.msra.mxu0 0.0
        %1167 = vmatprep.subr.mxu0 0.0
        %1168 = vmatpush2.msra.mxu0 0.0
        %1169 = vmatprep.subr.mxu0 0.0
        %1170 = vmatpush2.msra.mxu0 0.0
        %1171 = vmatprep.mubr.f32.mxu0 0.0
        %1172 = vmatmul.mubr.f32.gmra.mxu0 %v1081
        %v1173 = vpop.f32.mrf.mxu0
        %v1174 = vadd.f32 0.0, %v1173
        %v1175 = vpop.f32.mrf.mxu0
        %1176 = vmatprep.mubr.f32.mxu0 0.0
        %1177 = vmatmul.mubr.f32.gmra.mxu0 %v1084
        %v1178 = vpop.f32.mrf.mxu0
        %v1179 = vadd.f32 0.0, %v1178
        %v1180 = vpop.f32.mrf.mxu0
        %1181 = vmatprep.mubr.f32.mxu0 0.0
        %1182 = vmatmul.mubr.f32.gmra.mxu0 %v1087
        %v1183 = vpop.f32.mrf.mxu0
        %v1184 = vadd.f32 0.0, %v1183
        %v1185 = vpop.f32.mrf.mxu0
        %1186 = vmatprep.mubr.f32.mxu0 0.0
        %1187 = vmatmul.mubr.f32.gmra.mxu0 %v1090
        %v1188 = vpop.f32.mrf.mxu0
        %v1189 = vadd.f32 0.0, %v1188
        %v1190 = vpop.f32.mrf.mxu0
        %1191 = vmatprep.mubr.f32.mxu0 0.0
        %1192 = vmatmul.mubr.f32.gmra.mxu0 %v1093
        %v1193 = vpop.f32.mrf.mxu0
        %v1194 = vadd.f32 0.0, %v1193
        %v1195 = vpop.f32.mrf.mxu0
        %1196 = vmatprep.mubr.f32.mxu0 0.0
        %1197 = vmatmul.mubr.f32.gmra.mxu0 %v1096
        %v1198 = vpop.f32.mrf.mxu0
        %v1199 = vadd.f32 0.0, %v1198
        %v1200 = vpop.f32.mrf.mxu0
        %1201 = vmatprep.mubr.f32.mxu0 0.0
        %1202 = vmatmul.mubr.f32.gmra.mxu0 %v1099
        %v1203 = vpop.f32.mrf.mxu0
        %v1204 = vadd.f32 0.0, %v1203
        %v1205 = vpop.f32.mrf.mxu0
        %1206 = vmatprep.mubr.f32.mxu0 0.0
        %1207 = vmatmul.mubr.f32.gmra.mxu0 %v1102
        %v1208 = vpop.f32.mrf.mxu0
        %v1209 = vadd.f32 0.0, %v1208
        %v1210 = vpop.f32.mrf.mxu0
        %1211 = vdwg.mxu0
        %v1212 = vadd.f32 %v1062, %v1174
        %v1213 = vadd.f32 %v1063, %v1179
        %v1214 = vadd.f32 %v1064, %v1184
        %v1215 = vadd.f32 %v1065, %v1189
        %v1216 = vadd.f32 %v1066, %v1194
        %v1217 = vadd.f32 %v1067, %v1199
        %v1218 = vadd.f32 %v1068, %v1204
        %v1219 = vadd.f32 %v1069, %v1209
        %v1220 = vld [vmem:[%s474 + $0x2] sm:$0xff]
        %v1221 = vld [vmem:[%s474 + $0x12] sm:$0xff]
        %v1222 = vld [vmem:[%s474 + $0x22] sm:$0xff]
        %v1223 = vld [vmem:[%s474 + $0x32] sm:$0xff]
        %v1224 = vld [vmem:[%s474 + $0x42] sm:$0xff]
        %v1225 = vld [vmem:[%s474 + $0x52] sm:$0xff]
        %v1226 = vld [vmem:[%s474 + $0x62] sm:$0xff]
        %v1227 = vld [vmem:[%s474 + $0x72] sm:$0xff]
        %s1228 = scalar_lea.vmem %s3, 20
        %v1229 = vld [vmem:[%s1228] sm:$0xf]
        %v1231 = vsel %vm297, %v1220, 0
        %v1234 = vsel %vm297, %v1221, 0
        %v1237 = vsel %vm297, %v1222, 0
        %v1240 = vsel %vm297, %v1223, 0
        %v1243 = vsel %vm297, %v1224, 0
        %v1246 = vsel %vm297, %v1225, 0
        %v1249 = vsel %vm297, %v1226, 0
        %v1252 = vsel %vm297, %v1227, 0
        %v1255 = vsel %vm529, %v1229, 0
        %1257 = vmatprep.subr.mxu0 0.0
        %1258 = vmatpush1.msra.mxu0 0.0
        %1259 = vmatprep.subr.mxu0 0.0
        %1260 = vmatpush1.msra.mxu0 0.0
        %1261 = vmatprep.subr.mxu0 0.0
        %1262 = vmatpush1.msra.mxu0 0.0
        %1263 = vmatprep.subr.mxu0 0.0
        %1264 = vmatpush1.msra.mxu0 0.0
        %1265 = vmatprep.subr.mxu0 0.0
        %1266 = vmatpush1.msra.mxu0 0.0
        %1267 = vmatprep.subr.mxu0 0.0
        %1268 = vmatpush1.msra.mxu0 0.0
        %1269 = vmatprep.subr.mxu0 0.0
        %1270 = vmatpush1.msra.mxu0 0.0
        %1271 = vmatprep.subr.mxu0 0.0
        %1272 = vmatpush1.msra.mxu0 0.0
        %1273 = vmatprep.subr.mxu0 0.0
        %1274 = vmatpush1.msra.mxu0 0.0
        %1275 = vmatprep.subr.mxu0 0.0
        %1276 = vmatpush1.msra.mxu0 0.0
        %1277 = vmatprep.subr.mxu0 0.0
        %1278 = vmatpush1.msra.mxu0 0.0
        %1279 = vmatprep.subr.mxu0 0.0
        %1280 = vmatpush1.msra.mxu0 0.0
        %1281 = vmatprep.subr.mxu0 0.0
        %1282 = vmatpush1.msra.mxu0 0.0
        %1283 = vmatprep.subr.mxu0 0.0
        %1284 = vmatpush1.msra.mxu0 0.0
        %1285 = vmatprep.subr.mxu0 0.0
        %1286 = vmatpush1.msra.mxu0 0.0
        %1287 = vmatprep.subr.mxu0 0.0
        %1288 = vmatpush1.msra.mxu0 %v1255
        %1289 = vmatprep.subr.mxu0 0.0
        %1290 = vmatpush2.msra.mxu0 0.0
        %1291 = vmatprep.subr.mxu0 0.0
        %1292 = vmatpush2.msra.mxu0 0.0
        %1293 = vmatprep.subr.mxu0 0.0
        %1294 = vmatpush2.msra.mxu0 0.0
        %1295 = vmatprep.subr.mxu0 0.0
        %1296 = vmatpush2.msra.mxu0 0.0
        %1297 = vmatprep.subr.mxu0 0.0
        %1298 = vmatpush2.msra.mxu0 0.0
        %1299 = vmatprep.subr.mxu0 0.0
        %1300 = vmatpush2.msra.mxu0 0.0
        %1301 = vmatprep.subr.mxu0 0.0
        %1302 = vmatpush2.msra.mxu0 0.0
        %1303 = vmatprep.subr.mxu0 0.0
        %1304 = vmatpush2.msra.mxu0 0.0
        %1305 = vmatprep.subr.mxu0 0.0
        %1306 = vmatpush2.msra.mxu0 0.0
        %1307 = vmatprep.subr.mxu0 0.0
        %1308 = vmatpush2.msra.mxu0 0.0
        %1309 = vmatprep.subr.mxu0 0.0
        %1310 = vmatpush2.msra.mxu0 0.0
        %1311 = vmatprep.subr.mxu0 0.0
        %1312 = vmatpush2.msra.mxu0 0.0
        %1313 = vmatprep.subr.mxu0 0.0
        %1314 = vmatpush2.msra.mxu0 0.0
        %1315 = vmatprep.subr.mxu0 0.0
        %1316 = vmatpush2.msra.mxu0 0.0
        %1317 = vmatprep.subr.mxu0 0.0
        %1318 = vmatpush2.msra.mxu0 0.0
        %1319 = vmatprep.subr.mxu0 0.0
        %1320 = vmatpush2.msra.mxu0 0.0
        %1321 = vmatprep.mubr.f32.mxu0 0.0
        %1322 = vmatmul.mubr.f32.gmra.mxu0 %v1231
        %v1323 = vpop.f32.mrf.mxu0
        %v1324 = vadd.f32 0.0, %v1323
        %v1325 = vpop.f32.mrf.mxu0
        %1326 = vmatprep.mubr.f32.mxu0 0.0
        %1327 = vmatmul.mubr.f32.gmra.mxu0 %v1234
        %v1328 = vpop.f32.mrf.mxu0
        %v1329 = vadd.f32 0.0, %v1328
        %v1330 = vpop.f32.mrf.mxu0
        %1331 = vmatprep.mubr.f32.mxu0 0.0
        %1332 = vmatmul.mubr.f32.gmra.mxu0 %v1237
        %v1333 = vpop.f32.mrf.mxu0
        %v1334 = vadd.f32 0.0, %v1333
        %v1335 = vpop.f32.mrf.mxu0
        %1336 = vmatprep.mubr.f32.mxu0 0.0
        %1337 = vmatmul.mubr.f32.gmra.mxu0 %v1240
        %v1338 = vpop.f32.mrf.mxu0
        %v1339 = vadd.f32 0.0, %v1338
        %v1340 = vpop.f32.mrf.mxu0
        %1341 = vmatprep.mubr.f32.mxu0 0.0
        %1342 = vmatmul.mubr.f32.gmra.mxu0 %v1243
        %v1343 = vpop.f32.mrf.mxu0
        %v1344 = vadd.f32 0.0, %v1343
        %v1345 = vpop.f32.mrf.mxu0
        %1346 = vmatprep.mubr.f32.mxu0 0.0
        %1347 = vmatmul.mubr.f32.gmra.mxu0 %v1246
        %v1348 = vpop.f32.mrf.mxu0
        %v1349 = vadd.f32 0.0, %v1348
        %v1350 = vpop.f32.mrf.mxu0
        %1351 = vmatprep.mubr.f32.mxu0 0.0
        %1352 = vmatmul.mubr.f32.gmra.mxu0 %v1249
        %v1353 = vpop.f32.mrf.mxu0
        %v1354 = vadd.f32 0.0, %v1353
        %v1355 = vpop.f32.mrf.mxu0
        %1356 = vmatprep.mubr.f32.mxu0 0.0
        %1357 = vmatmul.mubr.f32.gmra.mxu0 %v1252
        %v1358 = vpop.f32.mrf.mxu0
        %v1359 = vadd.f32 0.0, %v1358
        %v1360 = vpop.f32.mrf.mxu0
        %1361 = vdwg.mxu0
        %v1362 = vadd.f32 %v1212, %v1324
        %v1363 = vadd.f32 %v1213, %v1329
        %v1364 = vadd.f32 %v1214, %v1334
        %v1365 = vadd.f32 %v1215, %v1339
        %v1366 = vadd.f32 %v1216, %v1344
        %v1367 = vadd.f32 %v1217, %v1349
        %v1368 = vadd.f32 %v1218, %v1354
        %v1369 = vadd.f32 %v1219, %v1359
        %s1370 = scalar_lea.vmem [#allocation2], 32
        %v1371 = vld [vmem:[%s1370] sm:$0xff]
        %v1372 = vld [vmem:[%s1370 + $0x10] sm:$0xff]
        %v1373 = vld [vmem:[%s1370 + $0x20] sm:$0xff]
        %v1374 = vld [vmem:[%s1370 + $0x30] sm:$0xff]
        %v1375 = vld [vmem:[%s1370 + $0x40] sm:$0xff]
        %v1376 = vld [vmem:[%s1370 + $0x50] sm:$0xff]
        %v1377 = vld [vmem:[%s1370 + $0x60] sm:$0xff]
        %v1378 = vld [vmem:[%s1370 + $0x70] sm:$0xff]
        %s1379 = scalar_lea.vmem %s3, 24
        %v1380 = vld [vmem:[%s1379] sm:$0xf]
        %v1382 = vsel %vm297, %v1371, 0
        %v1385 = vsel %vm297, %v1372, 0
        %v1388 = vsel %vm297, %v1373, 0
        %v1391 = vsel %vm297, %v1374, 0
        %v1394 = vsel %vm297, %v1375, 0
        %v1397 = vsel %vm297, %v1376, 0
        %v1400 = vsel %vm297, %v1377, 0
        %v1403 = vsel %vm297, %v1378, 0
        %v1406 = vsel %vm529, %v1380, 0
        %1408 = vmatprep.subr.mxu0 0.0
        %1409 = vmatpush1.msra.mxu0 0.0
        %1410 = vmatprep.subr.mxu0 0.0
        %1411 = vmatpush1.msra.mxu0 0.0
        %1412 = vmatprep.subr.mxu0 0.0
        %1413 = vmatpush1.msra.mxu0 0.0
        %1414 = vmatprep.subr.mxu0 0.0
        %1415 = vmatpush1.msra.mxu0 0.0
        %1416 = vmatprep.subr.mxu0 0.0
        %1417 = vmatpush1.msra.mxu0 0.0
        %1418 = vmatprep.subr.mxu0 0.0
        %1419 = vmatpush1.msra.mxu0 0.0
        %1420 = vmatprep.subr.mxu0 0.0
        %1421 = vmatpush1.msra.mxu0 0.0
        %1422 = vmatprep.subr.mxu0 0.0
        %1423 = vmatpush1.msra.mxu0 0.0
        %1424 = vmatprep.subr.mxu0 0.0
        %1425 = vmatpush1.msra.mxu0 0.0
        %1426 = vmatprep.subr.mxu0 0.0
        %1427 = vmatpush1.msra.mxu0 0.0
        %1428 = vmatprep.subr.mxu0 0.0
        %1429 = vmatpush1.msra.mxu0 0.0
        %1430 = vmatprep.subr.mxu0 0.0
        %1431 = vmatpush1.msra.mxu0 0.0
        %1432 = vmatprep.subr.mxu0 0.0
        %1433 = vmatpush1.msra.mxu0 0.0
        %1434 = vmatprep.subr.mxu0 0.0
        %1435 = vmatpush1.msra.mxu0 0.0
        %1436 = vmatprep.subr.mxu0 0.0
        %1437 = vmatpush1.msra.mxu0 0.0
        %1438 = vmatprep.subr.mxu0 0.0
        %1439 = vmatpush1.msra.mxu0 %v1406
        %1440 = vmatprep.subr.mxu0 0.0
        %1441 = vmatpush2.msra.mxu0 0.0
        %1442 = vmatprep.subr.mxu0 0.0
        %1443 = vmatpush2.msra.mxu0 0.0
        %1444 = vmatprep.subr.mxu0 0.0
        %1445 = vmatpush2.msra.mxu0 0.0
        %1446 = vmatprep.subr.mxu0 0.0
        %1447 = vmatpush2.msra.mxu0 0.0
        %1448 = vmatprep.subr.mxu0 0.0
        %1449 = vmatpush2.msra.mxu0 0.0
        %1450 = vmatprep.subr.mxu0 0.0
        %1451 = vmatpush2.msra.mxu0 0.0
        %1452 = vmatprep.subr.mxu0 0.0
        %1453 = vmatpush2.msra.mxu0 0.0
        %1454 = vmatprep.subr.mxu0 0.0
        %1455 = vmatpush2.msra.mxu0 0.0
        %1456 = vmatprep.subr.mxu0 0.0
        %1457 = vmatpush2.msra.mxu0 0.0
        %1458 = vmatprep.subr.mxu0 0.0
        %1459 = vmatpush2.msra.mxu0 0.0
        %1460 = vmatprep.subr.mxu0 0.0
        %1461 = vmatpush2.msra.mxu0 0.0
        %1462 = vmatprep.subr.mxu0 0.0
        %1463 = vmatpush2.msra.mxu0 0.0
        %1464 = vmatprep.subr.mxu0 0.0
        %1465 = vmatpush2.msra.mxu0 0.0
        %1466 = vmatprep.subr.mxu0 0.0
        %1467 = vmatpush2.msra.mxu0 0.0
        %1468 = vmatprep.subr.mxu0 0.0
        %1469 = vmatpush2.msra.mxu0 0.0
        %1470 = vmatprep.subr.mxu0 0.0
        %1471 = vmatpush2.msra.mxu0 0.0
        %1472 = vmatprep.mubr.f32.mxu0 0.0
        %1473 = vmatmul.mubr.f32.gmra.mxu0 %v1382
        %v1474 = vpop.f32.mrf.mxu0
        %v1475 = vadd.f32 0.0, %v1474
        %v1476 = vpop.f32.mrf.mxu0
        %1477 = vmatprep.mubr.f32.mxu0 0.0
        %1478 = vmatmul.mubr.f32.gmra.mxu0 %v1385
        %v1479 = vpop.f32.mrf.mxu0
        %v1480 = vadd.f32 0.0, %v1479
        %v1481 = vpop.f32.mrf.mxu0
        %1482 = vmatprep.mubr.f32.mxu0 0.0
        %1483 = vmatmul.mubr.f32.gmra.mxu0 %v1388
        %v1484 = vpop.f32.mrf.mxu0
        %v1485 = vadd.f32 0.0, %v1484
        %v1486 = vpop.f32.mrf.mxu0
        %1487 = vmatprep.mubr.f32.mxu0 0.0
        %1488 = vmatmul.mubr.f32.gmra.mxu0 %v1391
        %v1489 = vpop.f32.mrf.mxu0
        %v1490 = vadd.f32 0.0, %v1489
        %v1491 = vpop.f32.mrf.mxu0
        %1492 = vmatprep.mubr.f32.mxu0 0.0
        %1493 = vmatmul.mubr.f32.gmra.mxu0 %v1394
        %v1494 = vpop.f32.mrf.mxu0
        %v1495 = vadd.f32 0.0, %v1494
        %v1496 = vpop.f32.mrf.mxu0
        %1497 = vmatprep.mubr.f32.mxu0 0.0
        %1498 = vmatmul.mubr.f32.gmra.mxu0 %v1397
        %v1499 = vpop.f32.mrf.mxu0
        %v1500 = vadd.f32 0.0, %v1499
        %v1501 = vpop.f32.mrf.mxu0
        %1502 = vmatprep.mubr.f32.mxu0 0.0
        %1503 = vmatmul.mubr.f32.gmra.mxu0 %v1400
        %v1504 = vpop.f32.mrf.mxu0
        %v1505 = vadd.f32 0.0, %v1504
        %v1506 = vpop.f32.mrf.mxu0
        %1507 = vmatprep.mubr.f32.mxu0 0.0
        %1508 = vmatmul.mubr.f32.gmra.mxu0 %v1403
        %v1509 = vpop.f32.mrf.mxu0
        %v1510 = vadd.f32 0.0, %v1509
        %v1511 = vpop.f32.mrf.mxu0
        %1512 = vdwg.mxu0
        %v1513 = vadd.f32 %v1362, %v1475
        %v1514 = vadd.f32 %v1363, %v1480
        %v1515 = vadd.f32 %v1364, %v1485
        %v1516 = vadd.f32 %v1365, %v1490
        %v1517 = vadd.f32 %v1366, %v1495
        %v1518 = vadd.f32 %v1367, %v1500
        %v1519 = vadd.f32 %v1368, %v1505
        %v1520 = vadd.f32 %v1369, %v1510
        %v1521 = vld [vmem:[%s1370 + $0x1] sm:$0xff]
        %v1522 = vld [vmem:[%s1370 + $0x11] sm:$0xff]
        %v1523 = vld [vmem:[%s1370 + $0x21] sm:$0xff]
        %v1524 = vld [vmem:[%s1370 + $0x31] sm:$0xff]
        %v1525 = vld [vmem:[%s1370 + $0x41] sm:$0xff]
        %v1526 = vld [vmem:[%s1370 + $0x51] sm:$0xff]
        %v1527 = vld [vmem:[%s1370 + $0x61] sm:$0xff]
        %v1528 = vld [vmem:[%s1370 + $0x71] sm:$0xff]
        %s1529 = scalar_lea.vmem %s3, 28
        %v1530 = vld [vmem:[%s1529] sm:$0xf]
        %v1532 = vsel %vm297, %v1521, 0
        %v1535 = vsel %vm297, %v1522, 0
        %v1538 = vsel %vm297, %v1523, 0
        %v1541 = vsel %vm297, %v1524, 0
        %v1544 = vsel %vm297, %v1525, 0
        %v1547 = vsel %vm297, %v1526, 0
        %v1550 = vsel %vm297, %v1527, 0
        %v1553 = vsel %vm297, %v1528, 0
        %v1556 = vsel %vm529, %v1530, 0
        %1558 = vmatprep.subr.mxu0 0.0
        %1559 = vmatpush1.msra.mxu0 0.0
        %1560 = vmatprep.subr.mxu0 0.0
        %1561 = vmatpush1.msra.mxu0 0.0
        %1562 = vmatprep.subr.mxu0 0.0
        %1563 = vmatpush1.msra.mxu0 0.0
        %1564 = vmatprep.subr.mxu0 0.0
        %1565 = vmatpush1.msra.mxu0 0.0
        %1566 = vmatprep.subr.mxu0 0.0
        %1567 = vmatpush1.msra.mxu0 0.0
        %1568 = vmatprep.subr.mxu0 0.0
        %1569 = vmatpush1.msra.mxu0 0.0
        %1570 = vmatprep.subr.mxu0 0.0
        %1571 = vmatpush1.msra.mxu0 0.0
        %1572 = vmatprep.subr.mxu0 0.0
        %1573 = vmatpush1.msra.mxu0 0.0
        %1574 = vmatprep.subr.mxu0 0.0
        %1575 = vmatpush1.msra.mxu0 0.0
        %1576 = vmatprep.subr.mxu0 0.0
        %1577 = vmatpush1.msra.mxu0 0.0
        %1578 = vmatprep.subr.mxu0 0.0
        %1579 = vmatpush1.msra.mxu0 0.0
        %1580 = vmatprep.subr.mxu0 0.0
        %1581 = vmatpush1.msra.mxu0 0.0
        %1582 = vmatprep.subr.mxu0 0.0
        %1583 = vmatpush1.msra.mxu0 0.0
        %1584 = vmatprep.subr.mxu0 0.0
        %1585 = vmatpush1.msra.mxu0 0.0
        %1586 = vmatprep.subr.mxu0 0.0
        %1587 = vmatpush1.msra.mxu0 0.0
        %1588 = vmatprep.subr.mxu0 0.0
        %1589 = vmatpush1.msra.mxu0 %v1556
        %1590 = vmatprep.subr.mxu0 0.0
        %1591 = vmatpush2.msra.mxu0 0.0
        %1592 = vmatprep.subr.mxu0 0.0
        %1593 = vmatpush2.msra.mxu0 0.0
        %1594 = vmatprep.subr.mxu0 0.0
        %1595 = vmatpush2.msra.mxu0 0.0
        %1596 = vmatprep.subr.mxu0 0.0
        %1597 = vmatpush2.msra.mxu0 0.0
        %1598 = vmatprep.subr.mxu0 0.0
        %1599 = vmatpush2.msra.mxu0 0.0
        %1600 = vmatprep.subr.mxu0 0.0
        %1601 = vmatpush2.msra.mxu0 0.0
        %1602 = vmatprep.subr.mxu0 0.0
        %1603 = vmatpush2.msra.mxu0 0.0
        %1604 = vmatprep.subr.mxu0 0.0
        %1605 = vmatpush2.msra.mxu0 0.0
        %1606 = vmatprep.subr.mxu0 0.0
        %1607 = vmatpush2.msra.mxu0 0.0
        %1608 = vmatprep.subr.mxu0 0.0
        %1609 = vmatpush2.msra.mxu0 0.0
        %1610 = vmatprep.subr.mxu0 0.0
        %1611 = vmatpush2.msra.mxu0 0.0
        %1612 = vmatprep.subr.mxu0 0.0
        %1613 = vmatpush2.msra.mxu0 0.0
        %1614 = vmatprep.subr.mxu0 0.0
        %1615 = vmatpush2.msra.mxu0 0.0
        %1616 = vmatprep.subr.mxu0 0.0
        %1617 = vmatpush2.msra.mxu0 0.0
        %1618 = vmatprep.subr.mxu0 0.0
        %1619 = vmatpush2.msra.mxu0 0.0
        %1620 = vmatprep.subr.mxu0 0.0
        %1621 = vmatpush2.msra.mxu0 0.0
        %1622 = vmatprep.mubr.f32.mxu0 0.0
        %1623 = vmatmul.mubr.f32.gmra.mxu0 %v1532
        %v1624 = vpop.f32.mrf.mxu0
        %v1625 = vadd.f32 0.0, %v1624
        %v1626 = vpop.f32.mrf.mxu0
        %1627 = vmatprep.mubr.f32.mxu0 0.0
        %1628 = vmatmul.mubr.f32.gmra.mxu0 %v1535
        %v1629 = vpop.f32.mrf.mxu0
        %v1630 = vadd.f32 0.0, %v1629
        %v1631 = vpop.f32.mrf.mxu0
        %1632 = vmatprep.mubr.f32.mxu0 0.0
        %1633 = vmatmul.mubr.f32.gmra.mxu0 %v1538
        %v1634 = vpop.f32.mrf.mxu0
        %v1635 = vadd.f32 0.0, %v1634
        %v1636 = vpop.f32.mrf.mxu0
        %1637 = vmatprep.mubr.f32.mxu0 0.0
        %1638 = vmatmul.mubr.f32.gmra.mxu0 %v1541
        %v1639 = vpop.f32.mrf.mxu0
        %v1640 = vadd.f32 0.0, %v1639
        %v1641 = vpop.f32.mrf.mxu0
        %1642 = vmatprep.mubr.f32.mxu0 0.0
        %1643 = vmatmul.mubr.f32.gmra.mxu0 %v1544
        %v1644 = vpop.f32.mrf.mxu0
        %v1645 = vadd.f32 0.0, %v1644
        %v1646 = vpop.f32.mrf.mxu0
        %1647 = vmatprep.mubr.f32.mxu0 0.0
        %1648 = vmatmul.mubr.f32.gmra.mxu0 %v1547
        %v1649 = vpop.f32.mrf.mxu0
        %v1650 = vadd.f32 0.0, %v1649
        %v1651 = vpop.f32.mrf.mxu0
        %1652 = vmatprep.mubr.f32.mxu0 0.0
        %1653 = vmatmul.mubr.f32.gmra.mxu0 %v1550
        %v1654 = vpop.f32.mrf.mxu0
        %v1655 = vadd.f32 0.0, %v1654
        %v1656 = vpop.f32.mrf.mxu0
        %1657 = vmatprep.mubr.f32.mxu0 0.0
        %1658 = vmatmul.mubr.f32.gmra.mxu0 %v1553
        %v1659 = vpop.f32.mrf.mxu0
        %v1660 = vadd.f32 0.0, %v1659
        %v1661 = vpop.f32.mrf.mxu0
        %1662 = vdwg.mxu0
        %v1663 = vadd.f32 %v1513, %v1625
        %v1664 = vadd.f32 %v1514, %v1630
        %v1665 = vadd.f32 %v1515, %v1635
        %v1666 = vadd.f32 %v1516, %v1640
        %v1667 = vadd.f32 %v1517, %v1645
        %v1668 = vadd.f32 %v1518, %v1650
        %v1669 = vadd.f32 %v1519, %v1655
        %v1670 = vadd.f32 %v1520, %v1660
        %v1671 = vld [vmem:[%s1370 + $0x2] sm:$0xff]
        %v1672 = vld [vmem:[%s1370 + $0x12] sm:$0xff]
        %v1673 = vld [vmem:[%s1370 + $0x22] sm:$0xff]
        %v1674 = vld [vmem:[%s1370 + $0x32] sm:$0xff]
        %v1675 = vld [vmem:[%s1370 + $0x42] sm:$0xff]
        %v1676 = vld [vmem:[%s1370 + $0x52] sm:$0xff]
        %v1677 = vld [vmem:[%s1370 + $0x62] sm:$0xff]
        %v1678 = vld [vmem:[%s1370 + $0x72] sm:$0xff]
        %s1679 = scalar_lea.vmem %s3, 32
        %v1680 = vld [vmem:[%s1679] sm:$0xf]
        %v1682 = vsel %vm297, %v1671, 0
        %v1685 = vsel %vm297, %v1672, 0
        %v1688 = vsel %vm297, %v1673, 0
        %v1691 = vsel %vm297, %v1674, 0
        %v1694 = vsel %vm297, %v1675, 0
        %v1697 = vsel %vm297, %v1676, 0
        %v1700 = vsel %vm297, %v1677, 0
        %v1703 = vsel %vm297, %v1678, 0
        %v1706 = vsel %vm529, %v1680, 0
        %1708 = vmatprep.subr.mxu0 0.0
        %1709 = vmatpush1.msra.mxu0 0.0
        %1710 = vmatprep.subr.mxu0 0.0
        %1711 = vmatpush1.msra.mxu0 0.0
        %1712 = vmatprep.subr.mxu0 0.0
        %1713 = vmatpush1.msra.mxu0 0.0
        %1714 = vmatprep.subr.mxu0 0.0
        %1715 = vmatpush1.msra.mxu0 0.0
        %1716 = vmatprep.subr.mxu0 0.0
        %1717 = vmatpush1.msra.mxu0 0.0
        %1718 = vmatprep.subr.mxu0 0.0
        %1719 = vmatpush1.msra.mxu0 0.0
        %1720 = vmatprep.subr.mxu0 0.0
        %1721 = vmatpush1.msra.mxu0 0.0
        %1722 = vmatprep.subr.mxu0 0.0
        %1723 = vmatpush1.msra.mxu0 0.0
        %1724 = vmatprep.subr.mxu0 0.0
        %1725 = vmatpush1.msra.mxu0 0.0
        %1726 = vmatprep.subr.mxu0 0.0
        %1727 = vmatpush1.msra.mxu0 0.0
        %1728 = vmatprep.subr.mxu0 0.0
        %1729 = vmatpush1.msra.mxu0 0.0
        %1730 = vmatprep.subr.mxu0 0.0
        %1731 = vmatpush1.msra.mxu0 0.0
        %1732 = vmatprep.subr.mxu0 0.0
        %1733 = vmatpush1.msra.mxu0 0.0
        %1734 = vmatprep.subr.mxu0 0.0
        %1735 = vmatpush1.msra.mxu0 0.0
        %1736 = vmatprep.subr.mxu0 0.0
        %1737 = vmatpush1.msra.mxu0 0.0
        %1738 = vmatprep.subr.mxu0 0.0
        %1739 = vmatpush1.msra.mxu0 %v1706
        %1740 = vmatprep.subr.mxu0 0.0
        %1741 = vmatpush2.msra.mxu0 0.0
        %1742 = vmatprep.subr.mxu0 0.0
        %1743 = vmatpush2.msra.mxu0 0.0
        %1744 = vmatprep.subr.mxu0 0.0
        %1745 = vmatpush2.msra.mxu0 0.0
        %1746 = vmatprep.subr.mxu0 0.0
        %1747 = vmatpush2.msra.mxu0 0.0
        %1748 = vmatprep.subr.mxu0 0.0
        %1749 = vmatpush2.msra.mxu0 0.0
        %1750 = vmatprep.subr.mxu0 0.0
        %1751 = vmatpush2.msra.mxu0 0.0
        %1752 = vmatprep.subr.mxu0 0.0
        %1753 = vmatpush2.msra.mxu0 0.0
        %1754 = vmatprep.subr.mxu0 0.0
        %1755 = vmatpush2.msra.mxu0 0.0
        %1756 = vmatprep.subr.mxu0 0.0
        %1757 = vmatpush2.msra.mxu0 0.0
        %1758 = vmatprep.subr.mxu0 0.0
        %1759 = vmatpush2.msra.mxu0 0.0
        %1760 = vmatprep.subr.mxu0 0.0
        %1761 = vmatpush2.msra.mxu0 0.0
        %1762 = vmatprep.subr.mxu0 0.0
        %1763 = vmatpush2.msra.mxu0 0.0
        %1764 = vmatprep.subr.mxu0 0.0
        %1765 = vmatpush2.msra.mxu0 0.0
        %1766 = vmatprep.subr.mxu0 0.0
        %1767 = vmatpush2.msra.mxu0 0.0
        %1768 = vmatprep.subr.mxu0 0.0
        %1769 = vmatpush2.msra.mxu0 0.0
        %1770 = vmatprep.subr.mxu0 0.0
        %1771 = vmatpush2.msra.mxu0 0.0
        %1772 = vmatprep.mubr.f32.mxu0 0.0
        %1773 = vmatmul.mubr.f32.gmra.mxu0 %v1682
        %v1774 = vpop.f32.mrf.mxu0
        %v1775 = vadd.f32 0.0, %v1774
        %v1776 = vpop.f32.mrf.mxu0
        %1777 = vmatprep.mubr.f32.mxu0 0.0
        %1778 = vmatmul.mubr.f32.gmra.mxu0 %v1685
        %v1779 = vpop.f32.mrf.mxu0
        %v1780 = vadd.f32 0.0, %v1779
        %v1781 = vpop.f32.mrf.mxu0
        %1782 = vmatprep.mubr.f32.mxu0 0.0
        %1783 = vmatmul.mubr.f32.gmra.mxu0 %v1688
        %v1784 = vpop.f32.mrf.mxu0
        %v1785 = vadd.f32 0.0, %v1784
        %v1786 = vpop.f32.mrf.mxu0
        %1787 = vmatprep.mubr.f32.mxu0 0.0
        %1788 = vmatmul.mubr.f32.gmra.mxu0 %v1691
        %v1789 = vpop.f32.mrf.mxu0
        %v1790 = vadd.f32 0.0, %v1789
        %v1791 = vpop.f32.mrf.mxu0
        %1792 = vmatprep.mubr.f32.mxu0 0.0
        %1793 = vmatmul.mubr.f32.gmra.mxu0 %v1694
        %v1794 = vpop.f32.mrf.mxu0
        %v1795 = vadd.f32 0.0, %v1794
        %v1796 = vpop.f32.mrf.mxu0
        %1797 = vmatprep.mubr.f32.mxu0 0.0
        %1798 = vmatmul.mubr.f32.gmra.mxu0 %v1697
        %v1799 = vpop.f32.mrf.mxu0
        %v1800 = vadd.f32 0.0, %v1799
        %v1801 = vpop.f32.mrf.mxu0
        %1802 = vmatprep.mubr.f32.mxu0 0.0
        %1803 = vmatmul.mubr.f32.gmra.mxu0 %v1700
        %v1804 = vpop.f32.mrf.mxu0
        %v1805 = vadd.f32 0.0, %v1804
        %v1806 = vpop.f32.mrf.mxu0
        %1807 = vmatprep.mubr.f32.mxu0 0.0
        %1808 = vmatmul.mubr.f32.gmra.mxu0 %v1703
        %v1809 = vpop.f32.mrf.mxu0
        %v1810 = vadd.f32 0.0, %v1809
        %v1811 = vpop.f32.mrf.mxu0
        %1812 = vdwg.mxu0
        %v1813 = vadd.f32 %v1663, %v1775
        %v1814 = vadd.f32 %v1664, %v1780
        %v1815 = vadd.f32 %v1665, %v1785
        %v1816 = vadd.f32 %v1666, %v1790
        %v1817 = vadd.f32 %v1667, %v1795
        %v1818 = vadd.f32 %v1668, %v1800
        %v1819 = vadd.f32 %v1669, %v1805
        %v1820 = vadd.f32 %v1670, %v1810
        %v1822 = vlaneseq
        %v1823 = vshrl.u32 %v1822, 7
        %v1824 = vsub.s32 0, %v1823
        %v1825 = vrot.slane %v484, %v1824
        %v1827 = vadd.f32 %v1813, %v1825
        %v1828 = vadd.f32 %v1814, %v1825
        %v1829 = vadd.f32 %v1815, %v1825
        %v1830 = vadd.f32 %v1816, %v1825
        %v1831 = vadd.f32 %v1817, %v1825
        %v1832 = vadd.f32 %v1818, %v1825
        %v1833 = vadd.f32 %v1819, %v1825
        %v1834 = vadd.f32 %v1820, %v1825
        %v1835 = vmax.f32 %v1827, 0.0
        %v1836 = vmax.f32 %v1828, 0.0
        %v1837 = vmax.f32 %v1829, 0.0
        %v1838 = vmax.f32 %v1830, 0.0
        %v1839 = vmax.f32 %v1831, 0.0
        %v1840 = vmax.f32 %v1832, 0.0
        %v1841 = vmax.f32 %v1833, 0.0
        %v1842 = vmax.f32 %v1834, 0.0
        %v1843 = vld [vmem:[%s266] sm:$0xff]
        %v1844 = vld [vmem:[%s266 + $0x8] sm:$0xff]
        %v1845 = vld [vmem:[%s266 + $0x10] sm:$0xff]
        %v1846 = vld [vmem:[%s266 + $0x18] sm:$0xff]
        %v1847 = vld [vmem:[%s266 + $0x20] sm:$0xff]
        %v1848 = vld [vmem:[%s266 + $0x28] sm:$0xff]
        %v1849 = vld [vmem:[%s266 + $0x30] sm:$0xff]
        %v1850 = vld [vmem:[%s266 + $0x38] sm:$0xff]
        %v1852 = vlaneseq
        %v1853 = vshrl.u32 %v1852, 7
        %v1854 = vsub.s32 0, %v1853
        %v1855 = vrot.slane %v485, %v1854
        %v1858 = vsel %vm297, %v1835, 0
        %v1861 = vsel %vm297, %v1836, 0
        %v1864 = vsel %vm297, %v1837, 0
        %v1867 = vsel %vm297, %v1838, 0
        %v1870 = vsel %vm297, %v1839, 0
        %v1873 = vsel %vm297, %v1840, 0
        %v1876 = vsel %vm297, %v1841, 0
        %v1879 = vsel %vm297, %v1842, 0
        %v1882 = vsel %vm529, %v483, 0
        %1884 = vmatprep.subr.mxu0 0.0
        %1885 = vmatpush1.msra.mxu0 0.0
        %1886 = vmatprep.subr.mxu0 0.0
        %1887 = vmatpush1.msra.mxu0 0.0
        %1888 = vmatprep.subr.mxu0 0.0
        %1889 = vmatpush1.msra.mxu0 0.0
        %1890 = vmatprep.subr.mxu0 0.0
        %1891 = vmatpush1.msra.mxu0 0.0
        %1892 = vmatprep.subr.mxu0 0.0
        %1893 = vmatpush1.msra.mxu0 0.0
        %1894 = vmatprep.subr.mxu0 0.0
        %1895 = vmatpush1.msra.mxu0 0.0
        %1896 = vmatprep.subr.mxu0 0.0
        %1897 = vmatpush1.msra.mxu0 0.0
        %1898 = vmatprep.subr.mxu0 0.0
        %1899 = vmatpush1.msra.mxu0 0.0
        %1900 = vmatprep.subr.mxu0 0.0
        %1901 = vmatpush1.msra.mxu0 0.0
        %1902 = vmatprep.subr.mxu0 0.0
        %1903 = vmatpush1.msra.mxu0 0.0
        %1904 = vmatprep.subr.mxu0 0.0
        %1905 = vmatpush1.msra.mxu0 0.0
        %1906 = vmatprep.subr.mxu0 0.0
        %1907 = vmatpush1.msra.mxu0 0.0
        %1908 = vmatprep.subr.mxu0 0.0
        %1909 = vmatpush1.msra.mxu0 0.0
        %1910 = vmatprep.subr.mxu0 0.0
        %1911 = vmatpush1.msra.mxu0 0.0
        %1912 = vmatprep.subr.mxu0 0.0
        %1913 = vmatpush1.msra.mxu0 0.0
        %1914 = vmatprep.subr.mxu0 0.0
        %1915 = vmatpush1.msra.mxu0 %v1882
        %1916 = vmatprep.subr.mxu0 0.0
        %1917 = vmatpush2.msra.mxu0 0.0
        %1918 = vmatprep.subr.mxu0 0.0
        %1919 = vmatpush2.msra.mxu0 0.0
        %1920 = vmatprep.subr.mxu0 0.0
        %1921 = vmatpush2.msra.mxu0 0.0
        %1922 = vmatprep.subr.mxu0 0.0
        %1923 = vmatpush2.msra.mxu0 0.0
        %1924 = vmatprep.subr.mxu0 0.0
        %1925 = vmatpush2.msra.mxu0 0.0
        %1926 = vmatprep.subr.mxu0 0.0
        %1927 = vmatpush2.msra.mxu0 0.0
        %1928 = vmatprep.subr.mxu0 0.0
        %1929 = vmatpush2.msra.mxu0 0.0
        %1930 = vmatprep.subr.mxu0 0.0
        %1931 = vmatpush2.msra.mxu0 0.0
        %1932 = vmatprep.subr.mxu0 0.0
        %1933 = vmatpush2.msra.mxu0 0.0
        %1934 = vmatprep.subr.mxu0 0.0
        %1935 = vmatpush2.msra.mxu0 0.0
        %1936 = vmatprep.subr.mxu0 0.0
        %1937 = vmatpush2.msra.mxu0 0.0
        %1938 = vmatprep.subr.mxu0 0.0
        %1939 = vmatpush2.msra.mxu0 0.0
        %1940 = vmatprep.subr.mxu0 0.0
        %1941 = vmatpush2.msra.mxu0 0.0
        %1942 = vmatprep.subr.mxu0 0.0
        %1943 = vmatpush2.msra.mxu0 0.0
        %1944 = vmatprep.subr.mxu0 0.0
        %1945 = vmatpush2.msra.mxu0 0.0
        %1946 = vmatprep.subr.mxu0 0.0
        %1947 = vmatpush2.msra.mxu0 0.0
        %1948 = vmatprep.mubr.f32.mxu0 0.0
        %1949 = vmatmul.mubr.f32.gmra.mxu0 %v1858
        %v1950 = vpop.f32.mrf.mxu0
        %v1951 = vadd.f32 %v1855, %v1950
        %v1952 = vpop.f32.mrf.mxu0
        %1953 = vmatprep.mubr.f32.mxu0 0.0
        %1954 = vmatmul.mubr.f32.gmra.mxu0 %v1861
        %v1955 = vpop.f32.mrf.mxu0
        %v1956 = vadd.f32 %v1855, %v1955
        %v1957 = vpop.f32.mrf.mxu0
        %1958 = vmatprep.mubr.f32.mxu0 0.0
        %1959 = vmatmul.mubr.f32.gmra.mxu0 %v1864
        %v1960 = vpop.f32.mrf.mxu0
        %v1961 = vadd.f32 %v1855, %v1960
        %v1962 = vpop.f32.mrf.mxu0
        %1963 = vmatprep.mubr.f32.mxu0 0.0
        %1964 = vmatmul.mubr.f32.gmra.mxu0 %v1867
        %v1965 = vpop.f32.mrf.mxu0
        %v1966 = vadd.f32 %v1855, %v1965
        %v1967 = vpop.f32.mrf.mxu0
        %1968 = vmatprep.mubr.f32.mxu0 0.0
        %1969 = vmatmul.mubr.f32.gmra.mxu0 %v1870
        %v1970 = vpop.f32.mrf.mxu0
        %v1971 = vadd.f32 %v1855, %v1970
        %v1972 = vpop.f32.mrf.mxu0
        %1973 = vmatprep.mubr.f32.mxu0 0.0
        %1974 = vmatmul.mubr.f32.gmra.mxu0 %v1873
        %v1975 = vpop.f32.mrf.mxu0
        %v1976 = vadd.f32 %v1855, %v1975
        %v1977 = vpop.f32.mrf.mxu0
        %1978 = vmatprep.mubr.f32.mxu0 0.0
        %1979 = vmatmul.mubr.f32.gmra.mxu0 %v1876
        %v1980 = vpop.f32.mrf.mxu0
        %v1981 = vadd.f32 %v1855, %v1980
        %v1982 = vpop.f32.mrf.mxu0
        %1983 = vmatprep.mubr.f32.mxu0 0.0
        %1984 = vmatmul.mubr.f32.gmra.mxu0 %v1879
        %v1985 = vpop.f32.mrf.mxu0
        %v1986 = vadd.f32 %v1855, %v1985
        %v1987 = vpop.f32.mrf.mxu0
        %1988 = vdwg.mxu0
        %v1989 = vadd.f32 %v1951, %v1843
        %v1990 = vadd.f32 %v1956, %v1844
        %v1991 = vadd.f32 %v1961, %v1845
        %v1992 = vadd.f32 %v1966, %v1846
        %v1993 = vadd.f32 %v1971, %v1847
        %v1994 = vadd.f32 %v1976, %v1848
        %v1995 = vadd.f32 %v1981, %v1849
        %v1996 = vadd.f32 %v1986, %v1850
        %v1997 = vmax.f32 %v1989, 0.0
        %v1998 = vmax.f32 %v1990, 0.0
        %v1999 = vmax.f32 %v1991, 0.0
        %v2000 = vmax.f32 %v1992, 0.0
        %v2001 = vmax.f32 %v1993, 0.0
        %v2002 = vmax.f32 %v1994, 0.0
        %v2003 = vmax.f32 %v1995, 0.0
        %v2004 = vmax.f32 %v1996, 0.0
        %2005 = vst.msk [vmem:[%s296] sm:$0xff] %vm336, %v1997
        %2006 = vst.msk [vmem:[%s296 + $0x8] sm:$0xff] %vm336, %v1998
        %2007 = vst.msk [vmem:[%s296 + $0x10] sm:$0xff] %vm336, %v1999
        %2008 = vst.msk [vmem:[%s296 + $0x18] sm:$0xff] %vm336, %v2000
        %2009 = vst.msk [vmem:[%s296 + $0x20] sm:$0xff] %vm336, %v2001
        %2010 = vst.msk [vmem:[%s296 + $0x28] sm:$0xff] %vm336, %v2002
        %2011 = vst.msk [vmem:[%s296 + $0x30] sm:$0xff] %vm336, %v2003
        %2012 = vst.msk [vmem:[%s296 + $0x38] sm:$0xff] %vm336, %v2004
        %s2013 = sand.u32 %s184, 1
        %s2014 = scalar_lea.sflag [#allocation5], %s2013
        %s2015 = sand.u32 %s184, 1
        %s2016 = smul.addr %s2015, 64
        %s2017 = scalar_lea.vmem [#allocation6], %s2016
        // Predicated region
        $region53: #{tpu_custom_call.1} parent=47 // pred_check
          %p2018 = pneg %p194
        $region54: #{tpu_custom_call.1} parent=47 // pred_check_branch
          %2020 = sbr.rel (%p2018) target = $region56
        $region55: #{tpu_custom_call.1} parent=47 // pred_region
          %s2022 = ssub.s32 1024, 1024
          %2023 = vsyncadd %s2014, %s2022
          %s2024 = smul.addr %s24, 8
          %s2025 = smul.addr %s2024, 128
          %s2026 = scalar_lea.hbm %s7, %s2025
          %s2027 = sshll.u32 %s2017, 4
          %s2028 = int_to_ptr.vmem [resolvable:$true] %s2027
          %2033 = dma.vmem_to_hbm [thread:$0]  %s2028, 1024, %s2026, %s2014, 128, 128, 8
        $region56: #{tpu_custom_call.1} parent=47 // pred_fallthru
          _
      $region48: #{tpu_custom_call.1} parent=5 // pred_fallthru
        _
      %p2034 = scmp.le.s32.totalorder 2, %s19
      // Predicated region
      $region57: #{tpu_custom_call.1} parent=5 // pred_check
        %p2035 = pneg %p2034
      $region58: #{tpu_custom_call.1} parent=5 // pred_check_branch
        %2037 = sbr.rel (%p2035) target = $region60
      $region59: #{tpu_custom_call.1} parent=5 // pred_region
        %s2038 = ssub.s32 %s19, 2
        // Predicated region
        $region61: #{tpu_custom_call.1} parent=59 // pred_check
          %p2039 = pneg %p200
        $region62: #{tpu_custom_call.1} parent=59 // pred_check_branch
          %2041 = sbr.rel (%p2039) target = $region64
        $region63: #{tpu_custom_call.1} parent=59 // pred_region
          %s2042 = sand.u32 %s185, 1
          %s2043 = scalar_lea.sflag [#allocation5], %s2042
          %s2044 = sand.u32 %s185, 1
          %s2045 = smul.addr %s2044, 64
          %s2046 = scalar_lea.vmem [#allocation6], %s2045
          %2047 = dma.done %s2043, 1024
        $region64: #{tpu_custom_call.1} parent=59 // pred_fallthru
          _
      $region60: #{tpu_custom_call.1} parent=5 // pred_fallthru
        _
    $region6: #{tpu_custom_call.1} parent=1 // loop_footer
      %s23 = sadd.s32 1, %s19
    $region7: #{tpu_custom_call.1} parent=1 // loop_footer_branch
      %18 = sbr.rel target = $region3
    $region8: #{tpu_custom_call.1} parent=1 // loop_exit
      _
    %2048 = vsyncpa [#allocation4], 1
    %s2049 = scalar_lea.sflag [#allocation4], 1
    %2050 = vsyncpa %s2049, 1
    %2051 = vsyncpa [#allocation5], 1
    %s2052 = scalar_lea.sflag [#allocation5], 1
    %2053 = vsyncpa %s2052, 1

</llo_original>
